<compile_context>
chip_gen: v6e
topology: v6e:2x2x1
jax: 0.10.0
libtpu: 0.0.40
codegen_flags: <defaults>
</compile_context>

<pallas_src>
import numpy as np
import jax
import jax.numpy as jnp
from jax.experimental import pallas as pl
from jax.experimental.pallas import tpu as pltpu


def _round_up(x, m):
    return ((x + m - 1) // m) * m


def gru_chunk_kernel(gx_ref, mask_ref, w_h_ref, b_hn_ref, out_ref, hid_ref, h_ref):
    """One (batch-block, time-chunk) grid step of the GRU recurrence.

    gx_ref  : (Tt, Bblk, 3*Hp) bf16  x-side gate pre-activations (b_ir+b_hr, b_iz+b_hz,
                                     b_in already folded in); gate lanes [r | z | n],
                                     each gate padded to Hp lanes.
    mask_ref: (Tt, Bblk, 1)    f32   1.0 while t < length, else 0.0
    w_h_ref : (Hp, 3*Hp)       bf16  fused hidden->gate weights (same lane layout)
    b_hn_ref: (1, Hp)          f32   hidden-side bias of the n gate only
    out_ref : (Bblk, Tt, Hp)   f32   batch-major per-step outputs (0 past seq end)
    hid_ref : (Bblk, Hp)       f32   final hidden state (written on last time chunk)
    h_ref   : (Bblk, Hp)       f32   VMEM scratch carrying h across time chunks
    """
    tc = pl.program_id(1)

    @pl.when(tc == 0)
    def _():
        h_ref[...] = jnp.zeros_like(h_ref)

    tt, bblk, _ = gx_ref.shape
    hp = out_ref.shape[-1]

    # Loop-invariant loads / broadcasts hoisted out of the recurrence.
    w_h = w_h_ref[...]                                             # (Hp, 3Hp) bf16
    b_hn = jnp.broadcast_to(b_hn_ref[...], (bblk, hp))             # (Bblk, Hp) f32

    # TODO(synk): for large H, hold w_h weight-stationary in the MXU via
    # pltpu.matmul_push_rhs / matmul_acc_lhs / matmul_pop instead of re-feeding
    # the RHS every serial step.
    h = h_ref[...]                                                 # (Bblk, Hp) f32
    # Static unroll over the (small) chunk; long sequences are chunked by the grid.
    for t in range(tt):
        gx = gx_ref[t].astype(jnp.float32)                         # (Bblk, 3Hp)
        gh = jnp.dot(h.astype(jnp.bfloat16), w_h,
                     preferred_element_type=jnp.float32)           # bf16 MXU, f32 acc
        # r and z share one fused sigmoid over 2*Hp tile-aligned lanes.
        rz = jax.nn.sigmoid(gx[:, :2 * hp] + gh[:, :2 * hp])
        r, z = rz[:, :hp], rz[:, hp:]
        n = jnp.tanh(gx[:, 2 * hp:] + r * (gh[:, 2 * hp:] + b_hn))
        h_new = n + z * (h - n)                                    # == (1-z)*n + z*h

        m = mask_ref[t]                                            # (Bblk, 1) in {0,1}
        h = h + m * (h_new - h)                                    # freeze past seq end
        out_ref[:, t, :] = (m * h_new).astype(out_ref.dtype)       # zero-pad like pad_packed

    h_ref[...] = h

    @pl.when(tc == pl.num_programs(1) - 1)
    def _():
        hid_ref[...] = h.astype(hid_ref.dtype)


def plain_encoder_forward(token_ids, lengths, params, *, t_chunk=8, b_block=8):
    """token_ids: (B, T) int32, lengths: (B,) int32  ->  (out (B,T,H), hid (1,B,H)).

    Assumes max(lengths) == T (pad_packed_sequence's padded length).
    """
    assert b_block % 8 == 0
    embed = params["embed"]
    H = embed.shape[1]
    B, T = token_ids.shape

    # Aligned / padded sizes: gates -> 128-lane multiples, batch -> 8 sublanes,
    # time -> whole number of chunks.
    Hp = _round_up(H, 128)
    Bp = _round_up(max(B, b_block), b_block)
    Tt = _round_up(min(t_chunk, T), 8)
    Tp = _round_up(T, Tt)

    # --- glue: time-major embedding gather (dropout is eval-mode identity) -------
    # TODO(synk): training-mode dropout (p=0.2) would use pltpu.prng_seed/prng_random_bits.
    emb_tm = embed[token_ids.T].astype(jnp.float32)                # (T, B, H)
    emb_tm = jnp.pad(emb_tm, ((0, Tp - T), (0, Bp - B), (0, 0)))   # (Tp, Bp, H)

    # --- fuse PyTorch GRU weights, padding each gate to Hp lanes -----------------
    w_ih, w_hh = params["w_ih"], params["w_hh"]                    # (3H, H), rows [r; z; n]
    b_ih, b_hh = params["b_ih"], params["b_hh"]                    # (3H,)

    def fuse(w, rows):
        out = jnp.zeros((rows, 3 * Hp), jnp.float32)
        for g in range(3):
            out = out.at[:H, g * Hp:g * Hp + H].set(w[g * H:(g + 1) * H, :].T)
        return out

    w_i = fuse(w_ih, H)                                            # (H, 3Hp)
    w_h = fuse(w_hh, Hp)                                           # (Hp, 3Hp), padded rows = 0

    # r/z hidden biases folded into the x-side bias; only b_hn stays in the kernel.
    b_x = jnp.zeros((3 * Hp,), jnp.float32)
    b_x = b_x.at[0 * Hp:0 * Hp + H].set(b_ih[0 * H:1 * H] + b_hh[0 * H:1 * H])
    b_x = b_x.at[1 * Hp:1 * Hp + H].set(b_ih[1 * H:2 * H] + b_hh[1 * H:2 * H])
    b_x = b_x.at[2 * Hp:2 * Hp + H].set(b_ih[2 * H:3 * H])
    b_hn = jnp.zeros((1, Hp), jnp.float32).at[0, :H].set(b_hh[2 * H:3 * H])

    # --- hoisted x-side projection: one big bf16 MXU matmul outside the loop -----
    gx = jnp.einsum("tbh,hg->tbg",
                    emb_tm.astype(jnp.bfloat16), w_i.astype(jnp.bfloat16),
                    preferred_element_type=jnp.float32) + b_x
    gx = gx.astype(jnp.bfloat16)                                   # (Tp, Bp, 3Hp), streamed

    # --- validity mask precomputed once (1.0 while t < length) -------------------
    lengths_p = jnp.pad(lengths.astype(jnp.int32), (0, Bp - B))
    mask = (jnp.arange(Tp, dtype=jnp.int32)[:, None] < lengths_p[None, :])
    mask = mask.astype(jnp.float32)[..., None]                     # (Tp, Bp, 1)

    grid = (Bp // b_block, Tp // Tt)

    # VMEM budget: double-buffered streamed blocks + resident weights/carry.
    blk_bytes = 2 * (Tt * b_block * 3 * Hp * 2 + Tt * b_block * 4 + b_block * Tt * Hp * 4)
    fix_bytes = Hp * 3 * Hp * 2 + Hp * 4 + 2 * b_block * Hp * 4
    vmem_limit = int(min(max(4 * (blk_bytes + fix_bytes), 16 * 2**20), 48 * 2**20))

    out_p, hid_p = pl.pallas_call(
        gru_chunk_kernel,
        grid=grid,
        in_specs=[
            pl.BlockSpec((Tt, b_block, 3 * Hp), lambda b, tc: (tc, b, 0)),   # gx
            pl.BlockSpec((Tt, b_block, 1), lambda b, tc: (tc, b, 0)),        # mask
            pl.BlockSpec((Hp, 3 * Hp), lambda b, tc: (0, 0)),                # w_h (resident)
            pl.BlockSpec((1, Hp), lambda b, tc: (0, 0)),                     # b_hn
        ],
        out_specs=(
            pl.BlockSpec((b_block, Tt, Hp), lambda b, tc: (b, tc, 0)),       # out, batch-major
            pl.BlockSpec((b_block, Hp), lambda b, tc: (b, 0)),               # hid (accumulator)
        ),
        out_shape=(
            jax.ShapeDtypeStruct((Bp, Tp, Hp), jnp.float32),
            jax.ShapeDtypeStruct((Bp, Hp), jnp.float32),
        ),
        scratch_shapes=[pltpu.VMEM((b_block, Hp), jnp.float32)],             # h carry
        compiler_params=pltpu.CompilerParams(
            dimension_semantics=("parallel", "arbitrary"),
            vmem_limit_bytes=vmem_limit,
        ),
    )(gx, mask, w_h.astype(jnp.bfloat16), b_hn)

    out = out_p[:B, :T, :H]                                        # strip padding
    hid = hid_p[:B, :H]
    return out, hid[None]                                          # hid: (1, B, H)


def reference_forward(token_ids, lengths, params):
    """Pure-JAX f32 reference (same math, lax.scan)."""
    emb = params["embed"][token_ids].astype(jnp.float32)
    B, T, H = emb.shape
    w_ih, w_hh, b_ih, b_hh = params["w_ih"], params["w_hh"], params["b_ih"], params["b_hh"]
    w_ir, w_iz, w_in = (w_ih[i * H:(i + 1) * H].T for i in range(3))
    w_hr, w_hz, w_hn = (w_hh[i * H:(i + 1) * H].T for i in range(3))

    def step(h, xs):
        x_t, t = xs
        r = jax.nn.sigmoid(x_t @ w_ir + h @ w_hr + b_ih[:H] + b_hh[:H])
        z = jax.nn.sigmoid(x_t @ w_iz + h @ w_hz + b_ih[H:2 * H] + b_hh[H:2 * H])
        n = jnp.tanh(x_t @ w_in + b_ih[2 * H:] + r * (h @ w_hn + b_hh[2 * H:]))
        h_new = (1.0 - z) * n + z * h
        valid = lengths[:, None] > t
        h_next = jnp.where(valid, h_new, h)
        return h_next, jnp.where(valid, h_new, 0.0)

    h0 = jnp.zeros((B, H), jnp.float32)
    hT, outs = jax.lax.scan(step, h0, (jnp.transpose(emb, (1, 0, 2)), jnp.arange(T)))
    return jnp.transpose(outs, (1, 0, 2)), hT[None]


def make_params(key, vocab_size, hidden_size):
    k0, k1, k2, k3, k4 = jax.random.split(key, 5)
    bound = 1.0 / np.sqrt(hidden_size)
    return {
        "embed": jax.random.normal(k0, (vocab_size, hidden_size), jnp.float32),
        "w_ih": jax.random.uniform(k1, (3 * hidden_size, hidden_size), jnp.float32, -bound, bound),
        "w_hh": jax.random.uniform(k2, (3 * hidden_size, hidden_size), jnp.float32, -bound, bound),
        "b_ih": jax.random.uniform(k3, (3 * hidden_size,), jnp.float32, -bound, bound),
        "b_hh": jax.random.uniform(k4, (3 * hidden_size,), jnp.float32, -bound, bound),
    }


if __name__ == "__main__":
    VOCAB, HIDDEN, B, T = 50, 32, 4, 8
    key = jax.random.PRNGKey(0)
    kp, kx = jax.random.split(key)
    params = make_params(kp, VOCAB, HIDDEN)

    token_ids = jax.random.randint(kx, (B, T), 0, VOCAB, dtype=jnp.int32)
    lengths = jnp.array([8, 5, 3, 6], dtype=jnp.int32)   # max(lengths) == T

    out, hid = plain_encoder_forward(token_ids, lengths, params)
    out, hid = jax.block_until_ready((out, hid))

    out_ref, hid_ref = reference_forward(token_ids, lengths, params)
    # bf16 MXU operands (f32 accumulation) vs the pure-f32 reference -> relaxed tol.
    np.testing.assert_allclose(np.asarray(out), np.asarray(out_ref), atol=3e-2, rtol=3e-2)
    np.testing.assert_allclose(np.asarray(hid), np.asarray(hid_ref), atol=3e-2, rtol=3e-2)
    assert out.shape == (B, T, HIDDEN) and hid.shape == (1, B, HIDDEN)

    print("KERNEL_OK")
</pallas_src>

<mosaic_0001>
module attributes {stable_mosaic.version = 11 : i64} {
  func.func @gru_chunk_kernel(%arg0: i32, %arg1: i32, %arg2: memref<8x8x384xbf16, #tpu.memory_space<vmem>>, %arg3: memref<8x8x1xf32, #tpu.memory_space<vmem>>, %arg4: memref<128x384xbf16, #tpu.memory_space<vmem>>, %arg5: memref<1x128xf32, #tpu.memory_space<vmem>>, %arg6: memref<8x8x128xf32, #tpu.memory_space<vmem>>, %arg7: memref<8x128xf32, #tpu.memory_space<vmem>>, %arg8: memref<8x128xf32, #tpu.memory_space<vmem>>) attributes {dimension_semantics = [#tpu.dimension_semantics<parallel>, #tpu.dimension_semantics<arbitrary>], iteration_bounds = array<i64: 1, 1>, scalar_prefetch = 0 : i64, scratch_operands = 1 : i64, tpu.core_type = #tpu.core_type<tc>, window_params = [{transform_indices = @transform_0, window_bounds = array<i64: 8, 8, 384>}, {transform_indices = @transform_1, window_bounds = array<i64: 8, 8, 1>}, {pipeline_mode = #tpu.pipeline_mode<synchronous>, transform_indices = @transform_2, window_bounds = array<i64: 128, 384>}, {pipeline_mode = #tpu.pipeline_mode<synchronous>, transform_indices = @transform_3, window_bounds = array<i64: 1, 128>}, {transform_indices = @transform_4, window_bounds = array<i64: 8, 8, 128>}, {transform_indices = @transform_5, window_bounds = array<i64: 8, 128>}]} {
    %c0_i32 = arith.constant 0 : i32
    %0 = arith.cmpi eq, %arg1, %c0_i32 : i32
    %1 = arith.extui %0 : i1 to i32
    %c0_i32_0 = arith.constant 0 : i32
    %2 = arith.cmpi ne, %1, %c0_i32_0 : i32
    scf.if %2 {
      %cst_90 = arith.constant 0.000000e+00 : f32
      %292 = vector.broadcast %cst_90 : f32 to vector<8x128xf32>
      %c0_91 = arith.constant 0 : index
      %c0_92 = arith.constant 0 : index
      %293 = vector.load %arg8[%c0_91, %c0_92] : memref<8x128xf32, #tpu.memory_space<vmem>>, vector<8x128xf32>
      tpu.vector_store %arg8[%c0_91, %c0_92], %292 {strides = array<i32>} : memref<8x128xf32, #tpu.memory_space<vmem>>, vector<8x128xf32>,
    } else {
    }
    %c0 = arith.constant 0 : index
    %c0_1 = arith.constant 0 : index
    %3 = vector.load %arg4[%c0, %c0_1] : memref<128x384xbf16, #tpu.memory_space<vmem>>, vector<128x384xbf16>
    %c0_2 = arith.constant 0 : index
    %c0_3 = arith.constant 0 : index
    %4 = vector.load %arg5[%c0_2, %c0_3] : memref<1x128xf32, #tpu.memory_space<vmem>>, vector<1x128xf32>
    %5 = vector.shape_cast %4 : vector<1x128xf32> to vector<1x128xf32>
    %6 = vector.broadcast %5 : vector<1x128xf32> to vector<8x128xf32>
    %c0_4 = arith.constant 0 : index
    %c0_5 = arith.constant 0 : index
    %7 = vector.load %arg8[%c0_4, %c0_5] : memref<8x128xf32, #tpu.memory_space<vmem>>, vector<8x128xf32>
    %c0_6 = arith.constant 0 : index
    %c0_7 = arith.constant 0 : index
    %c0_8 = arith.constant 0 : index
    %8 = vector.load %arg2[%c0_6, %c0_7, %c0_8] : memref<8x8x384xbf16, #tpu.memory_space<vmem>>, vector<1x8x384xbf16>
    %9 = vector.shape_cast %8 : vector<1x8x384xbf16> to vector<8x384xbf16>
    %10 = arith.extf %9 : vector<8x384xbf16> to vector<8x384xf32>
    %11 = arith.truncf %7 : vector<8x128xf32> to vector<8x128xbf16>
    %cst = arith.constant dense<0.000000e+00> : vector<8x384xf32>
    %12 = tpu.matmul %11, %3, %cst {dimension_numbers = #tpu.dot_dimension_numbers<[1], [0], [0], [1], [0, 0, 1, 1], [], []>} : vector<8x128xbf16>, vector<128x384xbf16>, vector<8x384xf32> -> vector<8x384xf32>
    %13 = vector.extract_strided_slice %10 {offsets = [0, 0], sizes = [8, 256], strides = [1, 1]} : vector<8x384xf32> to vector<8x256xf32>
    %14 = vector.extract_strided_slice %12 {offsets = [0, 0], sizes = [8, 256], strides = [1, 1]} : vector<8x384xf32> to vector<8x256xf32>
    %15 = arith.addf %13, %14 : vector<8x256xf32>
    %16 = arith.negf %15 : vector<8x256xf32>
    %17 = math.exp %16 : vector<8x256xf32>
    %cst_9 = arith.constant 1.000000e+00 : f32
    %18 = vector.broadcast %cst_9 : f32 to vector<8x256xf32>
    %19 = arith.addf %18, %17 : vector<8x256xf32>
    %20 = arith.divf %18, %19 : vector<8x256xf32>
    %21 = vector.extract_strided_slice %20 {offsets = [0, 0], sizes = [8, 128], strides = [1, 1]} : vector<8x256xf32> to vector<8x128xf32>
    %22 = vector.extract_strided_slice %20 {offsets = [0, 128], sizes = [8, 128], strides = [1, 1]} : vector<8x256xf32> to vector<8x128xf32>
    %23 = vector.extract_strided_slice %10 {offsets = [0, 256], sizes = [8, 128], strides = [1, 1]} : vector<8x384xf32> to vector<8x128xf32>
    %24 = vector.extract_strided_slice %12 {offsets = [0, 256], sizes = [8, 128], strides = [1, 1]} : vector<8x384xf32> to vector<8x128xf32>
    %25 = arith.addf %24, %6 : vector<8x128xf32>
    %26 = arith.mulf %21, %25 : vector<8x128xf32>
    %27 = arith.addf %23, %26 : vector<8x128xf32>
    %28 = math.tanh %27 : vector<8x128xf32>
    %29 = arith.subf %7, %28 : vector<8x128xf32>
    %30 = arith.mulf %22, %29 : vector<8x128xf32>
    %31 = arith.addf %28, %30 : vector<8x128xf32>
    %c0_10 = arith.constant 0 : index
    %c0_11 = arith.constant 0 : index
    %c0_12 = arith.constant 0 : index
    %32 = vector.load %arg3[%c0_10, %c0_11, %c0_12] : memref<8x8x1xf32, #tpu.memory_space<vmem>>, vector<1x8x1xf32>
    %33 = vector.shape_cast %32 : vector<1x8x1xf32> to vector<8x1xf32>
    %34 = arith.subf %31, %7 : vector<8x128xf32>
    %35 = vector.broadcast %33 : vector<8x1xf32> to vector<8x128xf32>
    %36 = arith.mulf %35, %34 : vector<8x128xf32>
    %37 = arith.addf %7, %36 : vector<8x128xf32>
    %38 = vector.broadcast %33 : vector<8x1xf32> to vector<8x128xf32>
    %39 = arith.mulf %38, %31 : vector<8x128xf32>
    %c0_13 = arith.constant 0 : index
    %c0_14 = arith.constant 0 : index
    %c0_15 = arith.constant 0 : index
    %40 = vector.load %arg6[%c0_13, %c0_14, %c0_15] : memref<8x8x128xf32, #tpu.memory_space<vmem>>, vector<8x1x128xf32>
    %41 = vector.shape_cast %40 : vector<8x1x128xf32> to vector<8x128xf32>
    %42 = vector.shape_cast %39 : vector<8x128xf32> to vector<8x1x128xf32>
    tpu.vector_store %arg6[%c0_13, %c0_14, %c0_15], %42 {strides = array<i32>} : memref<8x8x128xf32, #tpu.memory_space<vmem>>, vector<8x1x128xf32>,
    %c1 = arith.constant 1 : index
    %c0_16 = arith.constant 0 : index
    %c0_17 = arith.constant 0 : index
    %43 = vector.load %arg2[%c1, %c0_16, %c0_17] : memref<8x8x384xbf16, #tpu.memory_space<vmem>>, vector<1x8x384xbf16>
    %44 = vector.shape_cast %43 : vector<1x8x384xbf16> to vector<8x384xbf16>
    %45 = arith.extf %44 : vector<8x384xbf16> to vector<8x384xf32>
    %46 = arith.truncf %37 : vector<8x128xf32> to vector<8x128xbf16>
    %cst_18 = arith.constant dense<0.000000e+00> : vector<8x384xf32>
    %47 = tpu.matmul %46, %3, %cst_18 {dimension_numbers = #tpu.dot_dimension_numbers<[1], [0], [0], [1], [0, 0, 1, 1], [], []>} : vector<8x128xbf16>, vector<128x384xbf16>, vector<8x384xf32> -> vector<8x384xf32>
    %48 = vector.extract_strided_slice %45 {offsets = [0, 0], sizes = [8, 256], strides = [1, 1]} : vector<8x384xf32> to vector<8x256xf32>
    %49 = vector.extract_strided_slice %47 {offsets = [0, 0], sizes = [8, 256], strides = [1, 1]} : vector<8x384xf32> to vector<8x256xf32>
    %50 = arith.addf %48, %49 : vector<8x256xf32>
    %51 = arith.negf %50 : vector<8x256xf32>
    %52 = math.exp %51 : vector<8x256xf32>
    %cst_19 = arith.constant 1.000000e+00 : f32
    %53 = vector.broadcast %cst_19 : f32 to vector<8x256xf32>
    %54 = arith.addf %53, %52 : vector<8x256xf32>
    %55 = arith.divf %53, %54 : vector<8x256xf32>
    %56 = vector.extract_strided_slice %55 {offsets = [0, 0], sizes = [8, 128], strides = [1, 1]} : vector<8x256xf32> to vector<8x128xf32>
    %57 = vector.extract_strided_slice %55 {offsets = [0, 128], sizes = [8, 128], strides = [1, 1]} : vector<8x256xf32> to vector<8x128xf32>
    %58 = vector.extract_strided_slice %45 {offsets = [0, 256], sizes = [8, 128], strides = [1, 1]} : vector<8x384xf32> to vector<8x128xf32>
    %59 = vector.extract_strided_slice %47 {offsets = [0, 256], sizes = [8, 128], strides = [1, 1]} : vector<8x384xf32> to vector<8x128xf32>
    %60 = arith.addf %59, %6 : vector<8x128xf32>
    %61 = arith.mulf %56, %60 : vector<8x128xf32>
    %62 = arith.addf %58, %61 : vector<8x128xf32>
    %63 = math.tanh %62 : vector<8x128xf32>
    %64 = arith.subf %37, %63 : vector<8x128xf32>
    %65 = arith.mulf %57, %64 : vector<8x128xf32>
    %66 = arith.addf %63, %65 : vector<8x128xf32>
    %c1_20 = arith.constant 1 : index
    %c0_21 = arith.constant 0 : index
    %c0_22 = arith.constant 0 : index
    %67 = vector.load %arg3[%c1_20, %c0_21, %c0_22] : memref<8x8x1xf32, #tpu.memory_space<vmem>>, vector<1x8x1xf32>
    %68 = vector.shape_cast %67 : vector<1x8x1xf32> to vector<8x1xf32>
    %69 = arith.subf %66, %37 : vector<8x128xf32>
    %70 = vector.broadcast %68 : vector<8x1xf32> to vector<8x128xf32>
    %71 = arith.mulf %70, %69 : vector<8x128xf32>
    %72 = arith.addf %37, %71 : vector<8x128xf32>
    %73 = vector.broadcast %68 : vector<8x1xf32> to vector<8x128xf32>
    %74 = arith.mulf %73, %66 : vector<8x128xf32>
    %c0_23 = arith.constant 0 : index
    %c1_24 = arith.constant 1 : index
    %c0_25 = arith.constant 0 : index
    %75 = vector.load %arg6[%c0_23, %c1_24, %c0_25] : memref<8x8x128xf32, #tpu.memory_space<vmem>>, vector<8x1x128xf32>
    %76 = vector.shape_cast %75 : vector<8x1x128xf32> to vector<8x128xf32>
    %77 = vector.shape_cast %74 : vector<8x128xf32> to vector<8x1x128xf32>
    tpu.vector_store %arg6[%c0_23, %c1_24, %c0_25], %77 {strides = array<i32>} : memref<8x8x128xf32, #tpu.memory_space<vmem>>, vector<8x1x128xf32>,
    %c2 = arith.constant 2 : index
    %c0_26 = arith.constant 0 : index
    %c0_27 = arith.constant 0 : index
    %78 = vector.load %arg2[%c2, %c0_26, %c0_27] : memref<8x8x384xbf16, #tpu.memory_space<vmem>>, vector<1x8x384xbf16>
    %79 = vector.shape_cast %78 : vector<1x8x384xbf16> to vector<8x384xbf16>
    %80 = arith.extf %79 : vector<8x384xbf16> to vector<8x384xf32>
    %81 = arith.truncf %72 : vector<8x128xf32> to vector<8x128xbf16>
    %cst_28 = arith.constant dense<0.000000e+00> : vector<8x384xf32>
    %82 = tpu.matmul %81, %3, %cst_28 {dimension_numbers = #tpu.dot_dimension_numbers<[1], [0], [0], [1], [0, 0, 1, 1], [], []>} : vector<8x128xbf16>, vector<128x384xbf16>, vector<8x384xf32> -> vector<8x384xf32>
    %83 = vector.extract_strided_slice %80 {offsets = [0, 0], sizes = [8, 256], strides = [1, 1]} : vector<8x384xf32> to vector<8x256xf32>
    %84 = vector.extract_strided_slice %82 {offsets = [0, 0], sizes = [8, 256], strides = [1, 1]} : vector<8x384xf32> to vector<8x256xf32>
    %85 = arith.addf %83, %84 : vector<8x256xf32>
    %86 = arith.negf %85 : vector<8x256xf32>
    %87 = math.exp %86 : vector<8x256xf32>
    %cst_29 = arith.constant 1.000000e+00 : f32
    %88 = vector.broadcast %cst_29 : f32 to vector<8x256xf32>
    %89 = arith.addf %88, %87 : vector<8x256xf32>
    %90 = arith.divf %88, %89 : vector<8x256xf32>
    %91 = vector.extract_strided_slice %90 {offsets = [0, 0], sizes = [8, 128], strides = [1, 1]} : vector<8x256xf32> to vector<8x128xf32>
    %92 = vector.extract_strided_slice %90 {offsets = [0, 128], sizes = [8, 128], strides = [1, 1]} : vector<8x256xf32> to vector<8x128xf32>
    %93 = vector.extract_strided_slice %80 {offsets = [0, 256], sizes = [8, 128], strides = [1, 1]} : vector<8x384xf32> to vector<8x128xf32>
    %94 = vector.extract_strided_slice %82 {offsets = [0, 256], sizes = [8, 128], strides = [1, 1]} : vector<8x384xf32> to vector<8x128xf32>
    %95 = arith.addf %94, %6 : vector<8x128xf32>
    %96 = arith.mulf %91, %95 : vector<8x128xf32>
    %97 = arith.addf %93, %96 : vector<8x128xf32>
    %98 = math.tanh %97 : vector<8x128xf32>
    %99 = arith.subf %72, %98 : vector<8x128xf32>
    %100 = arith.mulf %92, %99 : vector<8x128xf32>
    %101 = arith.addf %98, %100 : vector<8x128xf32>
    %c2_30 = arith.constant 2 : index
    %c0_31 = arith.constant 0 : index
    %c0_32 = arith.constant 0 : index
    %102 = vector.load %arg3[%c2_30, %c0_31, %c0_32] : memref<8x8x1xf32, #tpu.memory_space<vmem>>, vector<1x8x1xf32>
    %103 = vector.shape_cast %102 : vector<1x8x1xf32> to vector<8x1xf32>
    %104 = arith.subf %101, %72 : vector<8x128xf32>
    %105 = vector.broadcast %103 : vector<8x1xf32> to vector<8x128xf32>
    %106 = arith.mulf %105, %104 : vector<8x128xf32>
    %107 = arith.addf %72, %106 : vector<8x128xf32>
    %108 = vector.broadcast %103 : vector<8x1xf32> to vector<8x128xf32>
    %109 = arith.mulf %108, %101 : vector<8x128xf32>
    %c0_33 = arith.constant 0 : index
    %c2_34 = arith.constant 2 : index
    %c0_35 = arith.constant 0 : index
    %110 = vector.load %arg6[%c0_33, %c2_34, %c0_35] : memref<8x8x128xf32, #tpu.memory_space<vmem>>, vector<8x1x128xf32>
    %111 = vector.shape_cast %110 : vector<8x1x128xf32> to vector<8x128xf32>
    %112 = vector.shape_cast %109 : vector<8x128xf32> to vector<8x1x128xf32>
    tpu.vector_store %arg6[%c0_33, %c2_34, %c0_35], %112 {strides = array<i32>} : memref<8x8x128xf32, #tpu.memory_space<vmem>>, vector<8x1x128xf32>,
    %c3 = arith.constant 3 : index
    %c0_36 = arith.constant 0 : index
    %c0_37 = arith.constant 0 : index
    %113 = vector.load %arg2[%c3, %c0_36, %c0_37] : memref<8x8x384xbf16, #tpu.memory_space<vmem>>, vector<1x8x384xbf16>
    %114 = vector.shape_cast %113 : vector<1x8x384xbf16> to vector<8x384xbf16>
    %115 = arith.extf %114 : vector<8x384xbf16> to vector<8x384xf32>
    %116 = arith.truncf %107 : vector<8x128xf32> to vector<8x128xbf16>
    %cst_38 = arith.constant dense<0.000000e+00> : vector<8x384xf32>
    %117 = tpu.matmul %116, %3, %cst_38 {dimension_numbers = #tpu.dot_dimension_numbers<[1], [0], [0], [1], [0, 0, 1, 1], [], []>} : vector<8x128xbf16>, vector<128x384xbf16>, vector<8x384xf32> -> vector<8x384xf32>
    %118 = vector.extract_strided_slice %115 {offsets = [0, 0], sizes = [8, 256], strides = [1, 1]} : vector<8x384xf32> to vector<8x256xf32>
    %119 = vector.extract_strided_slice %117 {offsets = [0, 0], sizes = [8, 256], strides = [1, 1]} : vector<8x384xf32> to vector<8x256xf32>
    %120 = arith.addf %118, %119 : vector<8x256xf32>
    %121 = arith.negf %120 : vector<8x256xf32>
    %122 = math.exp %121 : vector<8x256xf32>
    %cst_39 = arith.constant 1.000000e+00 : f32
    %123 = vector.broadcast %cst_39 : f32 to vector<8x256xf32>
    %124 = arith.addf %123, %122 : vector<8x256xf32>
    %125 = arith.divf %123, %124 : vector<8x256xf32>
    %126 = vector.extract_strided_slice %125 {offsets = [0, 0], sizes = [8, 128], strides = [1, 1]} : vector<8x256xf32> to vector<8x128xf32>
    %127 = vector.extract_strided_slice %125 {offsets = [0, 128], sizes = [8, 128], strides = [1, 1]} : vector<8x256xf32> to vector<8x128xf32>
    %128 = vector.extract_strided_slice %115 {offsets = [0, 256], sizes = [8, 128], strides = [1, 1]} : vector<8x384xf32> to vector<8x128xf32>
    %129 = vector.extract_strided_slice %117 {offsets = [0, 256], sizes = [8, 128], strides = [1, 1]} : vector<8x384xf32> to vector<8x128xf32>
    %130 = arith.addf %129, %6 : vector<8x128xf32>
    %131 = arith.mulf %126, %130 : vector<8x128xf32>
    %132 = arith.addf %128, %131 : vector<8x128xf32>
    %133 = math.tanh %132 : vector<8x128xf32>
    %134 = arith.subf %107, %133 : vector<8x128xf32>
    %135 = arith.mulf %127, %134 : vector<8x128xf32>
    %136 = arith.addf %133, %135 : vector<8x128xf32>
    %c3_40 = arith.constant 3 : index
    %c0_41 = arith.constant 0 : index
    %c0_42 = arith.constant 0 : index
    %137 = vector.load %arg3[%c3_40, %c0_41, %c0_42] : memref<8x8x1xf32, #tpu.memory_space<vmem>>, vector<1x8x1xf32>
    %138 = vector.shape_cast %137 : vector<1x8x1xf32> to vector<8x1xf32>
    %139 = arith.subf %136, %107 : vector<8x128xf32>
    %140 = vector.broadcast %138 : vector<8x1xf32> to vector<8x128xf32>
    %141 = arith.mulf %140, %139 : vector<8x128xf32>
    %142 = arith.addf %107, %141 : vector<8x128xf32>
    %143 = vector.broadcast %138 : vector<8x1xf32> to vector<8x128xf32>
    %144 = arith.mulf %143, %136 : vector<8x128xf32>
    %c0_43 = arith.constant 0 : index
    %c3_44 = arith.constant 3 : index
    %c0_45 = arith.constant 0 : index
    %145 = vector.load %arg6[%c0_43, %c3_44, %c0_45] : memref<8x8x128xf32, #tpu.memory_space<vmem>>, vector<8x1x128xf32>
    %146 = vector.shape_cast %145 : vector<8x1x128xf32> to vector<8x128xf32>
    %147 = vector.shape_cast %144 : vector<8x128xf32> to vector<8x1x128xf32>
    tpu.vector_store %arg6[%c0_43, %c3_44, %c0_45], %147 {strides = array<i32>} : memref<8x8x128xf32, #tpu.memory_space<vmem>>, vector<8x1x128xf32>,
    %c4 = arith.constant 4 : index
    %c0_46 = arith.constant 0 : index
    %c0_47 = arith.constant 0 : index
    %148 = vector.load %arg2[%c4, %c0_46, %c0_47] : memref<8x8x384xbf16, #tpu.memory_space<vmem>>, vector<1x8x384xbf16>
    %149 = vector.shape_cast %148 : vector<1x8x384xbf16> to vector<8x384xbf16>
    %150 = arith.extf %149 : vector<8x384xbf16> to vector<8x384xf32>
    %151 = arith.truncf %142 : vector<8x128xf32> to vector<8x128xbf16>
    %cst_48 = arith.constant dense<0.000000e+00> : vector<8x384xf32>
    %152 = tpu.matmul %151, %3, %cst_48 {dimension_numbers = #tpu.dot_dimension_numbers<[1], [0], [0], [1], [0, 0, 1, 1], [], []>} : vector<8x128xbf16>, vector<128x384xbf16>, vector<8x384xf32> -> vector<8x384xf32>
    %153 = vector.extract_strided_slice %150 {offsets = [0, 0], sizes = [8, 256], strides = [1, 1]} : vector<8x384xf32> to vector<8x256xf32>
    %154 = vector.extract_strided_slice %152 {offsets = [0, 0], sizes = [8, 256], strides = [1, 1]} : vector<8x384xf32> to vector<8x256xf32>
    %155 = arith.addf %153, %154 : vector<8x256xf32>
    %156 = arith.negf %155 : vector<8x256xf32>
    %157 = math.exp %156 : vector<8x256xf32>
    %cst_49 = arith.constant 1.000000e+00 : f32
    %158 = vector.broadcast %cst_49 : f32 to vector<8x256xf32>
    %159 = arith.addf %158, %157 : vector<8x256xf32>
    %160 = arith.divf %158, %159 : vector<8x256xf32>
    %161 = vector.extract_strided_slice %160 {offsets = [0, 0], sizes = [8, 128], strides = [1, 1]} : vector<8x256xf32> to vector<8x128xf32>
    %162 = vector.extract_strided_slice %160 {offsets = [0, 128], sizes = [8, 128], strides = [1, 1]} : vector<8x256xf32> to vector<8x128xf32>
    %163 = vector.extract_strided_slice %150 {offsets = [0, 256], sizes = [8, 128], strides = [1, 1]} : vector<8x384xf32> to vector<8x128xf32>
    %164 = vector.extract_strided_slice %152 {offsets = [0, 256], sizes = [8, 128], strides = [1, 1]} : vector<8x384xf32> to vector<8x128xf32>
    %165 = arith.addf %164, %6 : vector<8x128xf32>
    %166 = arith.mulf %161, %165 : vector<8x128xf32>
    %167 = arith.addf %163, %166 : vector<8x128xf32>
    %168 = math.tanh %167 : vector<8x128xf32>
    %169 = arith.subf %142, %168 : vector<8x128xf32>
    %170 = arith.mulf %162, %169 : vector<8x128xf32>
    %171 = arith.addf %168, %170 : vector<8x128xf32>
    %c4_50 = arith.constant 4 : index
    %c0_51 = arith.constant 0 : index
    %c0_52 = arith.constant 0 : index
    %172 = vector.load %arg3[%c4_50, %c0_51, %c0_52] : memref<8x8x1xf32, #tpu.memory_space<vmem>>, vector<1x8x1xf32>
    %173 = vector.shape_cast %172 : vector<1x8x1xf32> to vector<8x1xf32>
    %174 = arith.subf %171, %142 : vector<8x128xf32>
    %175 = vector.broadcast %173 : vector<8x1xf32> to vector<8x128xf32>
    %176 = arith.mulf %175, %174 : vector<8x128xf32>
    %177 = arith.addf %142, %176 : vector<8x128xf32>
    %178 = vector.broadcast %173 : vector<8x1xf32> to vector<8x128xf32>
    %179 = arith.mulf %178, %171 : vector<8x128xf32>
    %c0_53 = arith.constant 0 : index
    %c4_54 = arith.constant 4 : index
    %c0_55 = arith.constant 0 : index
    %180 = vector.load %arg6[%c0_53, %c4_54, %c0_55] : memref<8x8x128xf32, #tpu.memory_space<vmem>>, vector<8x1x128xf32>
    %181 = vector.shape_cast %180 : vector<8x1x128xf32> to vector<8x128xf32>
    %182 = vector.shape_cast %179 : vector<8x128xf32> to vector<8x1x128xf32>
    tpu.vector_store %arg6[%c0_53, %c4_54, %c0_55], %182 {strides = array<i32>} : memref<8x8x128xf32, #tpu.memory_space<vmem>>, vector<8x1x128xf32>,
    %c5 = arith.constant 5 : index
    %c0_56 = arith.constant 0 : index
    %c0_57 = arith.constant 0 : index
    %183 = vector.load %arg2[%c5, %c0_56, %c0_57] : memref<8x8x384xbf16, #tpu.memory_space<vmem>>, vector<1x8x384xbf16>
    %184 = vector.shape_cast %183 : vector<1x8x384xbf16> to vector<8x384xbf16>
    %185 = arith.extf %184 : vector<8x384xbf16> to vector<8x384xf32>
    %186 = arith.truncf %177 : vector<8x128xf32> to vector<8x128xbf16>
    %cst_58 = arith.constant dense<0.000000e+00> : vector<8x384xf32>
    %187 = tpu.matmul %186, %3, %cst_58 {dimension_numbers = #tpu.dot_dimension_numbers<[1], [0], [0], [1], [0, 0, 1, 1], [], []>} : vector<8x128xbf16>, vector<128x384xbf16>, vector<8x384xf32> -> vector<8x384xf32>
    %188 = vector.extract_strided_slice %185 {offsets = [0, 0], sizes = [8, 256], strides = [1, 1]} : vector<8x384xf32> to vector<8x256xf32>
    %189 = vector.extract_strided_slice %187 {offsets = [0, 0], sizes = [8, 256], strides = [1, 1]} : vector<8x384xf32> to vector<8x256xf32>
    %190 = arith.addf %188, %189 : vector<8x256xf32>
    %191 = arith.negf %190 : vector<8x256xf32>
    %192 = math.exp %191 : vector<8x256xf32>
    %cst_59 = arith.constant 1.000000e+00 : f32
    %193 = vector.broadcast %cst_59 : f32 to vector<8x256xf32>
    %194 = arith.addf %193, %192 : vector<8x256xf32>
    %195 = arith.divf %193, %194 : vector<8x256xf32>
    %196 = vector.extract_strided_slice %195 {offsets = [0, 0], sizes = [8, 128], strides = [1, 1]} : vector<8x256xf32> to vector<8x128xf32>
    %197 = vector.extract_strided_slice %195 {offsets = [0, 128], sizes = [8, 128], strides = [1, 1]} : vector<8x256xf32> to vector<8x128xf32>
    %198 = vector.extract_strided_slice %185 {offsets = [0, 256], sizes = [8, 128], strides = [1, 1]} : vector<8x384xf32> to vector<8x128xf32>
    %199 = vector.extract_strided_slice %187 {offsets = [0, 256], sizes = [8, 128], strides = [1, 1]} : vector<8x384xf32> to vector<8x128xf32>
    %200 = arith.addf %199, %6 : vector<8x128xf32>
    %201 = arith.mulf %196, %200 : vector<8x128xf32>
    %202 = arith.addf %198, %201 : vector<8x128xf32>
    %203 = math.tanh %202 : vector<8x128xf32>
    %204 = arith.subf %177, %203 : vector<8x128xf32>
    %205 = arith.mulf %197, %204 : vector<8x128xf32>
    %206 = arith.addf %203, %205 : vector<8x128xf32>
    %c5_60 = arith.constant 5 : index
    %c0_61 = arith.constant 0 : index
    %c0_62 = arith.constant 0 : index
    %207 = vector.load %arg3[%c5_60, %c0_61, %c0_62] : memref<8x8x1xf32, #tpu.memory_space<vmem>>, vector<1x8x1xf32>
    %208 = vector.shape_cast %207 : vector<1x8x1xf32> to vector<8x1xf32>
    %209 = arith.subf %206, %177 : vector<8x128xf32>
    %210 = vector.broadcast %208 : vector<8x1xf32> to vector<8x128xf32>
    %211 = arith.mulf %210, %209 : vector<8x128xf32>
    %212 = arith.addf %177, %211 : vector<8x128xf32>
    %213 = vector.broadcast %208 : vector<8x1xf32> to vector<8x128xf32>
    %214 = arith.mulf %213, %206 : vector<8x128xf32>
    %c0_63 = arith.constant 0 : index
    %c5_64 = arith.constant 5 : index
    %c0_65 = arith.constant 0 : index
    %215 = vector.load %arg6[%c0_63, %c5_64, %c0_65] : memref<8x8x128xf32, #tpu.memory_space<vmem>>, vector<8x1x128xf32>
    %216 = vector.shape_cast %215 : vector<8x1x128xf32> to vector<8x128xf32>
    %217 = vector.shape_cast %214 : vector<8x128xf32> to vector<8x1x128xf32>
    tpu.vector_store %arg6[%c0_63, %c5_64, %c0_65], %217 {strides = array<i32>} : memref<8x8x128xf32, #tpu.memory_space<vmem>>, vector<8x1x128xf32>,
    %c6 = arith.constant 6 : index
    %c0_66 = arith.constant 0 : index
    %c0_67 = arith.constant 0 : index
    %218 = vector.load %arg2[%c6, %c0_66, %c0_67] : memref<8x8x384xbf16, #tpu.memory_space<vmem>>, vector<1x8x384xbf16>
    %219 = vector.shape_cast %218 : vector<1x8x384xbf16> to vector<8x384xbf16>
    %220 = arith.extf %219 : vector<8x384xbf16> to vector<8x384xf32>
    %221 = arith.truncf %212 : vector<8x128xf32> to vector<8x128xbf16>
    %cst_68 = arith.constant dense<0.000000e+00> : vector<8x384xf32>
    %222 = tpu.matmul %221, %3, %cst_68 {dimension_numbers = #tpu.dot_dimension_numbers<[1], [0], [0], [1], [0, 0, 1, 1], [], []>} : vector<8x128xbf16>, vector<128x384xbf16>, vector<8x384xf32> -> vector<8x384xf32>
    %223 = vector.extract_strided_slice %220 {offsets = [0, 0], sizes = [8, 256], strides = [1, 1]} : vector<8x384xf32> to vector<8x256xf32>
    %224 = vector.extract_strided_slice %222 {offsets = [0, 0], sizes = [8, 256], strides = [1, 1]} : vector<8x384xf32> to vector<8x256xf32>
    %225 = arith.addf %223, %224 : vector<8x256xf32>
    %226 = arith.negf %225 : vector<8x256xf32>
    %227 = math.exp %226 : vector<8x256xf32>
    %cst_69 = arith.constant 1.000000e+00 : f32
    %228 = vector.broadcast %cst_69 : f32 to vector<8x256xf32>
    %229 = arith.addf %228, %227 : vector<8x256xf32>
    %230 = arith.divf %228, %229 : vector<8x256xf32>
    %231 = vector.extract_strided_slice %230 {offsets = [0, 0], sizes = [8, 128], strides = [1, 1]} : vector<8x256xf32> to vector<8x128xf32>
    %232 = vector.extract_strided_slice %230 {offsets = [0, 128], sizes = [8, 128], strides = [1, 1]} : vector<8x256xf32> to vector<8x128xf32>
    %233 = vector.extract_strided_slice %220 {offsets = [0, 256], sizes = [8, 128], strides = [1, 1]} : vector<8x384xf32> to vector<8x128xf32>
    %234 = vector.extract_strided_slice %222 {offsets = [0, 256], sizes = [8, 128], strides = [1, 1]} : vector<8x384xf32> to vector<8x128xf32>
    %235 = arith.addf %234, %6 : vector<8x128xf32>
    %236 = arith.mulf %231, %235 : vector<8x128xf32>
    %237 = arith.addf %233, %236 : vector<8x128xf32>
    %238 = math.tanh %237 : vector<8x128xf32>
    %239 = arith.subf %212, %238 : vector<8x128xf32>
    %240 = arith.mulf %232, %239 : vector<8x128xf32>
    %241 = arith.addf %238, %240 : vector<8x128xf32>
    %c6_70 = arith.constant 6 : index
    %c0_71 = arith.constant 0 : index
    %c0_72 = arith.constant 0 : index
    %242 = vector.load %arg3[%c6_70, %c0_71, %c0_72] : memref<8x8x1xf32, #tpu.memory_space<vmem>>, vector<1x8x1xf32>
    %243 = vector.shape_cast %242 : vector<1x8x1xf32> to vector<8x1xf32>
    %244 = arith.subf %241, %212 : vector<8x128xf32>
    %245 = vector.broadcast %243 : vector<8x1xf32> to vector<8x128xf32>
    %246 = arith.mulf %245, %244 : vector<8x128xf32>
    %247 = arith.addf %212, %246 : vector<8x128xf32>
    %248 = vector.broadcast %243 : vector<8x1xf32> to vector<8x128xf32>
    %249 = arith.mulf %248, %241 : vector<8x128xf32>
    %c0_73 = arith.constant 0 : index
    %c6_74 = arith.constant 6 : index
    %c0_75 = arith.constant 0 : index
    %250 = vector.load %arg6[%c0_73, %c6_74, %c0_75] : memref<8x8x128xf32, #tpu.memory_space<vmem>>, vector<8x1x128xf32>
    %251 = vector.shape_cast %250 : vector<8x1x128xf32> to vector<8x128xf32>
    %252 = vector.shape_cast %249 : vector<8x128xf32> to vector<8x1x128xf32>
    tpu.vector_store %arg6[%c0_73, %c6_74, %c0_75], %252 {strides = array<i32>} : memref<8x8x128xf32, #tpu.memory_space<vmem>>, vector<8x1x128xf32>,
    %c7 = arith.constant 7 : index
    %c0_76 = arith.constant 0 : index
    %c0_77 = arith.constant 0 : index
    %253 = vector.load %arg2[%c7, %c0_76, %c0_77] : memref<8x8x384xbf16, #tpu.memory_space<vmem>>, vector<1x8x384xbf16>
    %254 = vector.shape_cast %253 : vector<1x8x384xbf16> to vector<8x384xbf16>
    %255 = arith.extf %254 : vector<8x384xbf16> to vector<8x384xf32>
    %256 = arith.truncf %247 : vector<8x128xf32> to vector<8x128xbf16>
    %cst_78 = arith.constant dense<0.000000e+00> : vector<8x384xf32>
    %257 = tpu.matmul %256, %3, %cst_78 {dimension_numbers = #tpu.dot_dimension_numbers<[1], [0], [0], [1], [0, 0, 1, 1], [], []>} : vector<8x128xbf16>, vector<128x384xbf16>, vector<8x384xf32> -> vector<8x384xf32>
    %258 = vector.extract_strided_slice %255 {offsets = [0, 0], sizes = [8, 256], strides = [1, 1]} : vector<8x384xf32> to vector<8x256xf32>
    %259 = vector.extract_strided_slice %257 {offsets = [0, 0], sizes = [8, 256], strides = [1, 1]} : vector<8x384xf32> to vector<8x256xf32>
    %260 = arith.addf %258, %259 : vector<8x256xf32>
    %261 = arith.negf %260 : vector<8x256xf32>
    %262 = math.exp %261 : vector<8x256xf32>
    %cst_79 = arith.constant 1.000000e+00 : f32
    %263 = vector.broadcast %cst_79 : f32 to vector<8x256xf32>
    %264 = arith.addf %263, %262 : vector<8x256xf32>
    %265 = arith.divf %263, %264 : vector<8x256xf32>
    %266 = vector.extract_strided_slice %265 {offsets = [0, 0], sizes = [8, 128], strides = [1, 1]} : vector<8x256xf32> to vector<8x128xf32>
    %267 = vector.extract_strided_slice %265 {offsets = [0, 128], sizes = [8, 128], strides = [1, 1]} : vector<8x256xf32> to vector<8x128xf32>
    %268 = vector.extract_strided_slice %255 {offsets = [0, 256], sizes = [8, 128], strides = [1, 1]} : vector<8x384xf32> to vector<8x128xf32>
    %269 = vector.extract_strided_slice %257 {offsets = [0, 256], sizes = [8, 128], strides = [1, 1]} : vector<8x384xf32> to vector<8x128xf32>
    %270 = arith.addf %269, %6 : vector<8x128xf32>
    %271 = arith.mulf %266, %270 : vector<8x128xf32>
    %272 = arith.addf %268, %271 : vector<8x128xf32>
    %273 = math.tanh %272 : vector<8x128xf32>
    %274 = arith.subf %247, %273 : vector<8x128xf32>
    %275 = arith.mulf %267, %274 : vector<8x128xf32>
    %276 = arith.addf %273, %275 : vector<8x128xf32>
    %c7_80 = arith.constant 7 : index
    %c0_81 = arith.constant 0 : index
    %c0_82 = arith.constant 0 : index
    %277 = vector.load %arg3[%c7_80, %c0_81, %c0_82] : memref<8x8x1xf32, #tpu.memory_space<vmem>>, vector<1x8x1xf32>
    %278 = vector.shape_cast %277 : vector<1x8x1xf32> to vector<8x1xf32>
    %279 = arith.subf %276, %247 : vector<8x128xf32>
    %280 = vector.broadcast %278 : vector<8x1xf32> to vector<8x128xf32>
    %281 = arith.mulf %280, %279 : vector<8x128xf32>
    %282 = arith.addf %247, %281 : vector<8x128xf32>
    %283 = vector.broadcast %278 : vector<8x1xf32> to vector<8x128xf32>
    %284 = arith.mulf %283, %276 : vector<8x128xf32>
    %c0_83 = arith.constant 0 : index
    %c7_84 = arith.constant 7 : index
    %c0_85 = arith.constant 0 : index
    %285 = vector.load %arg6[%c0_83, %c7_84, %c0_85] : memref<8x8x128xf32, #tpu.memory_space<vmem>>, vector<8x1x128xf32>
    %286 = vector.shape_cast %285 : vector<8x1x128xf32> to vector<8x128xf32>
    %287 = vector.shape_cast %284 : vector<8x128xf32> to vector<8x1x128xf32>
    tpu.vector_store %arg6[%c0_83, %c7_84, %c0_85], %287 {strides = array<i32>} : memref<8x8x128xf32, #tpu.memory_space<vmem>>, vector<8x1x128xf32>,
    %c0_86 = arith.constant 0 : index
    %c0_87 = arith.constant 0 : index
    %288 = vector.load %arg8[%c0_86, %c0_87] : memref<8x128xf32, #tpu.memory_space<vmem>>, vector<8x128xf32>
    tpu.vector_store %arg8[%c0_86, %c0_87], %282 {strides = array<i32>} : memref<8x128xf32, #tpu.memory_space<vmem>>, vector<8x128xf32>,
    %c0_i32_88 = arith.constant 0 : i32
    %289 = arith.cmpi eq, %arg1, %c0_i32_88 : i32
    %290 = arith.extui %289 : i1 to i32
    %c0_i32_89 = arith.constant 0 : i32
    %291 = arith.cmpi ne, %290, %c0_i32_89 : i32
    scf.if %291 {
      %c0_90 = arith.constant 0 : index
      %c0_91 = arith.constant 0 : index
      %292 = vector.load %arg7[%c0_90, %c0_91] : memref<8x128xf32, #tpu.memory_space<vmem>>, vector<8x128xf32>
      tpu.vector_store %arg7[%c0_90, %c0_91], %282 {strides = array<i32>} : memref<8x128xf32, #tpu.memory_space<vmem>>, vector<8x128xf32>,
    } else {
    }
    return
  }
  func.func @transform_0(%arg0: i32, %arg1: i32) -> (i32, i32, i32) {
    %c0_i32 = arith.constant 0 : i32
    %c0_i32_0 = arith.constant 0 : i32
    return %arg1, %arg0, %c0_i32 : i32, i32, i32
  }
  func.func @transform_1(%arg0: i32, %arg1: i32) -> (i32, i32, i32) {
    %c0_i32 = arith.constant 0 : i32
    %c0_i32_0 = arith.constant 0 : i32
    return %arg1, %arg0, %c0_i32 : i32, i32, i32
  }
  func.func @transform_2(%arg0: i32, %arg1: i32) -> (i32, i32) {
    %c0_i32 = arith.constant 0 : i32
    %c0_i32_0 = arith.constant 0 : i32
    %c0_i32_1 = arith.constant 0 : i32
    return %c0_i32, %c0_i32_0 : i32, i32
  }
  func.func @transform_3(%arg0: i32, %arg1: i32) -> (i32, i32) {
    %c0_i32 = arith.constant 0 : i32
    %c0_i32_0 = arith.constant 0 : i32
    %c0_i32_1 = arith.constant 0 : i32
    return %c0_i32, %c0_i32_0 : i32, i32
  }
  func.func @transform_4(%arg0: i32, %arg1: i32) -> (i32, i32, i32) {
    %c0_i32 = arith.constant 0 : i32
    %c0_i32_0 = arith.constant 0 : i32
    return %arg0, %arg1, %c0_i32 : i32, i32, i32
  }
  func.func @transform_5(%arg0: i32, %arg1: i32) -> (i32, i32) {
    %c0_i32 = arith.constant 0 : i32
    %c0_i32_0 = arith.constant 0 : i32
    return %arg0, %c0_i32 : i32, i32
  }
}

</mosaic_0001>

<llo_original>
// kernel: tpu_custom_call.1
$region0: #{tpu_custom_call.1}
  #allocation0 [shape = 'u32[]', space=smem, size = 0x4, offset = 0x4, fixed_abs, tag = 'smem constant byte address 0x4 - core index']
  #allocation1 [shape = 'u32[144,128]{1,0:T(1,128)}', space=vmem, size = 0x12000, scoped, tag = 'internal scratch']
  #allocation2 [shape = 'f32[8,128]{1,0:T(8,128)}', space=vmem, size = 0x1000, scoped, tag = 'scratch operand']
  %s0 = inlined_call_operand.hbm [shape: bf16[8,8,384], index: 0, kind: input, shape index: {}]
  %s1 = inlined_call_operand.vmem [shape: f32[8,8,1], index: 1, kind: input, shape index: {}]
  %s2 = inlined_call_operand.hbm [shape: bf16[128,384], index: 2, kind: input, shape index: {}]
  %s3 = inlined_call_operand.vmem [shape: f32[1,128], index: 3, kind: input, shape index: {}]
  %s4 = inlined_call_operand.hbm [shape: f32[8,8,128], index: 4, kind: output, shape index: {0}]
  %s5 = inlined_call_operand.hbm [shape: f32[8,128], index: 5, kind: output, shape index: {1}]
  %6 = xla_tuple %s4, %s5
  %s7 = sld [smem:[#allocation0]]
  $region50: #{tpu_custom_call.1} parent=0
    _
  %s9 = ssub.s32 1, %s7
  %s10 = scalar_select 0, %s9, %s7
  $region1: #{tpu_custom_call.1} parent=0
    #allocation3 [shape = 'u8[49152]{0}', space=vmem, size = 0xc000, scoped, tag = 'input window, operand 0, single buffered']
    #allocation4 [shape = 's32[1]{0}', space=sflag, size = 0x4, scoped, tag = 'scoped memory for tpu_custom_call.1']
    #allocation5 [shape = 's32[1]{0}', space=sflag, size = 0x4, scoped, tag = 'scoped memory for tpu_custom_call.1']
    #allocation6 [shape = 'u8[98304]{0}', space=vmem, size = 0x18000, scoped, tag = 'input window, operand 2, single buffered']
    #allocation7 [shape = 's32[1]{0}', space=sflag, size = 0x4, scoped, tag = 'scoped memory for tpu_custom_call.1']
    #allocation8 [shape = 'u8[32768]{0}', space=vmem, size = 0x8000, scoped, tag = 'output window, operand 0, single buffered']
    #allocation9 [shape = 'u8[4096]{0}', space=vmem, size = 0x1000, scoped, tag = 'output window, operand 1, single buffered']
    #allocation10 [shape = 's32[1]{0}', space=sflag, size = 0x4, scoped, tag = 'scoped memory for tpu_custom_call.1']
    %11 = vsyncpa [#allocation4], 0
    %12 = vsyncpa [#allocation7], 0
    %13 = vsyncpa [#allocation5], 0
    %14 = vsyncpa [#allocation10], 0
    // Predicated region
    $region2: #{tpu_custom_call.1} parent=1 // pred_check
      _
    $region3: #{tpu_custom_call.1} parent=1 // pred_check_branch
      %16 = sbr.rel (0) target = $region5
    $region4: #{tpu_custom_call.1} parent=1 // pred_region
      %s18 = ssub.s32 1536, 1536
      %19 = vsyncadd [#allocation4], %s18
      %s20 = sshll.u32 [#allocation3], 4
      %s21 = int_to_ptr.vmem [resolvable:$true] %s20
      %26 = dma.hbm_to_vmem [thread:$0]  %s0, 1536, %s21, [#allocation4], 192, 192, 12
    $region5: #{tpu_custom_call.1} parent=1 // pred_fallthru
      _
    // Predicated region
    $region6: #{tpu_custom_call.1} parent=1 // pred_check
      _
    $region7: #{tpu_custom_call.1} parent=1 // pred_check_branch
      %28 = sbr.rel (0) target = $region9
    $region8: #{tpu_custom_call.1} parent=1 // pred_region
      _
    $region9: #{tpu_custom_call.1} parent=1 // pred_fallthru
      _
    // Predicated region
    $region10: #{tpu_custom_call.1} parent=1 // pred_check
      _
    $region11: #{tpu_custom_call.1} parent=1 // pred_check_branch
      %30 = sbr.rel (0) target = $region13
    $region12: #{tpu_custom_call.1} parent=1 // pred_region
      %s32 = ssub.s32 3072, 3072
      %33 = vsyncadd [#allocation7], %s32
      %s34 = sshll.u32 [#allocation6], 4
      %s35 = int_to_ptr.vmem [resolvable:$true] %s34
      %40 = dma.hbm_to_vmem [thread:$0]  %s2, 3072, %s35, [#allocation7], 192, 192, 12
    $region13: #{tpu_custom_call.1} parent=1 // pred_fallthru
      _
    // Predicated region
    $region14: #{tpu_custom_call.1} parent=1 // pred_check
      _
    $region15: #{tpu_custom_call.1} parent=1 // pred_check_branch
      %42 = sbr.rel (0) target = $region17
    $region16: #{tpu_custom_call.1} parent=1 // pred_region
      _
    $region17: #{tpu_custom_call.1} parent=1 // pred_fallthru
      _
    // Predicated region
    $region18: #{tpu_custom_call.1} parent=1 // pred_check
      _
    $region19: #{tpu_custom_call.1} parent=1 // pred_check_branch
      %44 = sbr.rel (0) target = $region21
    $region20: #{tpu_custom_call.1} parent=1 // pred_region
      %45 = dma.done [#allocation4], 1536
    $region21: #{tpu_custom_call.1} parent=1 // pred_fallthru
      _
    // Predicated region
    $region22: #{tpu_custom_call.1} parent=1 // pred_check
      _
    $region23: #{tpu_custom_call.1} parent=1 // pred_check_branch
      %47 = sbr.rel (0) target = $region25
    $region24: #{tpu_custom_call.1} parent=1 // pred_region
      %48 = dma.done [#allocation7], 3072
    $region25: #{tpu_custom_call.1} parent=1 // pred_fallthru
      _
    %p50 = scmp.eq.s32.totalorder 0, 0
    // Predicated region
    $region26: #{tpu_custom_call.1} parent=1 // pred_check
      %p51 = pneg %p50
    $region27: #{tpu_custom_call.1} parent=1 // pred_check_branch
      %53 = sbr.rel (%p51) target = $region29
    $region28: #{tpu_custom_call.1} parent=1 // pred_region
      %54 = vst [vmem:[#allocation2] sm:$0xff] 0.0
    $region29: #{tpu_custom_call.1} parent=1 // pred_fallthru
      _
    %v55 = vld [vmem:[#allocation6] sm:$0xff]
    %v56 = vld [vmem:[#allocation6 + $0x8] sm:$0xf]
    %v57 = vld [vmem:[#allocation6 + $0xc] sm:$0xff]
    %v58 = vld [vmem:[#allocation6 + $0x14] sm:$0xf]
    %v59 = vld [vmem:[#allocation6 + $0x18] sm:$0xff]
    %v60 = vld [vmem:[#allocation6 + $0x20] sm:$0xf]
    %v61 = vld [vmem:[#allocation6 + $0x24] sm:$0xff]
    %v62 = vld [vmem:[#allocation6 + $0x2c] sm:$0xf]
    %v63 = vld [vmem:[#allocation6 + $0x30] sm:$0xff]
    %v64 = vld [vmem:[#allocation6 + $0x38] sm:$0xf]
    %v65 = vld [vmem:[#allocation6 + $0x3c] sm:$0xff]
    %v66 = vld [vmem:[#allocation6 + $0x44] sm:$0xf]
    %v67 = vld [vmem:[#allocation6 + $0x48] sm:$0xff]
    %v68 = vld [vmem:[#allocation6 + $0x50] sm:$0xf]
    %v69 = vld [vmem:[#allocation6 + $0x54] sm:$0xff]
    %v70 = vld [vmem:[#allocation6 + $0x5c] sm:$0xf]
    %v71 = vld [vmem:[#allocation6 + $0x60] sm:$0xff]
    %v72 = vld [vmem:[#allocation6 + $0x68] sm:$0xf]
    %v73 = vld [vmem:[#allocation6 + $0x6c] sm:$0xff]
    %v74 = vld [vmem:[#allocation6 + $0x74] sm:$0xf]
    %v75 = vld [vmem:[#allocation6 + $0x78] sm:$0xff]
    %v76 = vld [vmem:[#allocation6 + $0x80] sm:$0xf]
    %v77 = vld [vmem:[#allocation6 + $0x84] sm:$0xff]
    %v78 = vld [vmem:[#allocation6 + $0x8c] sm:$0xf]
    %v79 = vld [vmem:[#allocation6 + $0x90] sm:$0xff]
    %v80 = vld [vmem:[#allocation6 + $0x98] sm:$0xf]
    %v81 = vld [vmem:[#allocation6 + $0x9c] sm:$0xff]
    %v82 = vld [vmem:[#allocation6 + $0xa4] sm:$0xf]
    %v83 = vld [vmem:[#allocation6 + $0xa8] sm:$0xff]
    %v84 = vld [vmem:[#allocation6 + $0xb0] sm:$0xf]
    %v85 = vld [vmem:[#allocation6 + $0xb4] sm:$0xff]
    %v86 = vld [vmem:[#allocation6 + $0xbc] sm:$0xf]
    %v87 = vld [vmem:[%s3] sm:$0x1]
    %v89 = vlaneseq
    %v90 = vshrl.u32 %v89, 7
    %v91 = vsub.s32 0, %v90
    %v92 = vrot.slane %v87, %v91
    %v94 = vld [vmem:[#allocation2] sm:$0xff]
    %v95 = vld [vmem:[#allocation3] sm:$0xff]
    %v96 = vld [vmem:[#allocation3 + $0x8] sm:$0xf]
    %v97 = vunpack.c.l.bf16 %v95
    %v98 = vunpack.c.h.bf16 %v95
    %v99 = vunpack.c.l.bf16 %v96
    %v100 = vpack.c.bf16 %v94, %v94
    %v133 = vunpack.c.l.b16 %v55
    %v134 = vunpack.c.h.b16 %v55
    %v135 = vunpack.c.l.b16 %v56
    %v136 = vunpack.c.l.b16 %v57
    %v137 = vunpack.c.h.b16 %v57
    %v138 = vunpack.c.l.b16 %v58
    %v139 = vunpack.c.l.b16 %v59
    %v140 = vunpack.c.h.b16 %v59
    %v141 = vunpack.c.l.b16 %v60
    %v142 = vunpack.c.l.b16 %v61
    %v143 = vunpack.c.h.b16 %v61
    %v144 = vunpack.c.l.b16 %v62
    %v145 = vunpack.c.l.b16 %v63
    %v146 = vunpack.c.h.b16 %v63
    %v147 = vunpack.c.l.b16 %v64
    %v148 = vunpack.c.l.b16 %v65
    %v149 = vunpack.c.h.b16 %v65
    %v150 = vunpack.c.l.b16 %v66
    %v151 = vunpack.c.l.b16 %v67
    %v152 = vunpack.c.h.b16 %v67
    %v153 = vunpack.c.l.b16 %v68
    %v154 = vunpack.c.l.b16 %v69
    %v155 = vunpack.c.h.b16 %v69
    %v156 = vunpack.c.l.b16 %v70
    %v157 = vunpack.c.l.b16 %v71
    %v158 = vunpack.c.h.b16 %v71
    %v159 = vunpack.c.l.b16 %v72
    %v160 = vunpack.c.l.b16 %v73
    %v161 = vunpack.c.h.b16 %v73
    %v162 = vunpack.c.l.b16 %v74
    %v163 = vunpack.c.l.b16 %v75
    %v164 = vunpack.c.h.b16 %v75
    %v165 = vunpack.c.l.b16 %v76
    %v166 = vunpack.c.l.b16 %v77
    %v167 = vunpack.c.h.b16 %v77
    %v168 = vunpack.c.l.b16 %v78
    %v169 = vunpack.c.l.b16 %v79
    %v170 = vunpack.c.h.b16 %v79
    %v171 = vunpack.c.l.b16 %v80
    %v172 = vunpack.c.l.b16 %v81
    %v173 = vunpack.c.h.b16 %v81
    %v174 = vunpack.c.l.b16 %v82
    %v175 = vunpack.c.l.b16 %v83
    %v176 = vunpack.c.h.b16 %v83
    %v177 = vunpack.c.l.b16 %v84
    %v178 = vunpack.c.l.b16 %v85
    %v179 = vunpack.c.h.b16 %v85
    %v180 = vunpack.c.l.b16 %v86
    %v181 = vpack.c.b16 %v136, %v133
    %v182 = vpack.c.b16 %v137, %v134
    %v183 = vpack.c.b16 %v138, %v135
    %v184 = vpack.c.b16 %v142, %v139
    %v185 = vpack.c.b16 %v143, %v140
    %v186 = vpack.c.b16 %v144, %v141
    %v187 = vpack.c.b16 %v148, %v145
    %v188 = vpack.c.b16 %v149, %v146
    %v189 = vpack.c.b16 %v150, %v147
    %v190 = vpack.c.b16 %v154, %v151
    %v191 = vpack.c.b16 %v155, %v152
    %v192 = vpack.c.b16 %v156, %v153
    %v193 = vpack.c.b16 %v160, %v157
    %v194 = vpack.c.b16 %v161, %v158
    %v195 = vpack.c.b16 %v162, %v159
    %v196 = vpack.c.b16 %v166, %v163
    %v197 = vpack.c.b16 %v167, %v164
    %v198 = vpack.c.b16 %v168, %v165
    %v199 = vpack.c.b16 %v172, %v169
    %v200 = vpack.c.b16 %v173, %v170
    %v201 = vpack.c.b16 %v174, %v171
    %v202 = vpack.c.b16 %v178, %v175
    %v203 = vpack.c.b16 %v179, %v176
    %v204 = vpack.c.b16 %v180, %v177
    %229 = vmatprep.subr.bf16.mxu0 %v203
    %230 = vmatpush1.bf16.msra.mxu0 %v202
    %231 = vmatprep.subr.bf16.mxu0 %v200
    %232 = vmatpush1.bf16.msra.mxu0 %v199
    %233 = vmatprep.subr.bf16.mxu0 %v197
    %234 = vmatpush1.bf16.msra.mxu0 %v196
    %235 = vmatprep.subr.bf16.mxu0 %v194
    %236 = vmatpush1.bf16.msra.mxu0 %v193
    %237 = vmatprep.subr.bf16.mxu0 %v191
    %238 = vmatpush1.bf16.msra.mxu0 %v190
    %239 = vmatprep.subr.bf16.mxu0 %v188
    %240 = vmatpush1.bf16.msra.mxu0 %v187
    %241 = vmatprep.subr.bf16.mxu0 %v185
    %242 = vmatpush1.bf16.msra.mxu0 %v184
    %243 = vmatprep.subr.bf16.mxu0 %v182
    %244 = vmatpush1.bf16.msra.mxu0 %v181
    %245 = vmatprep.subr.bf16.mxu0 0
    %246 = vmatpush2.bf16.msra.mxu0 0
    %247 = vmatprep.subr.bf16.mxu0 0
    %248 = vmatpush2.bf16.msra.mxu0 0
    %249 = vmatprep.subr.bf16.mxu0 0
    %250 = vmatpush2.bf16.msra.mxu0 0
    %251 = vmatprep.subr.bf16.mxu0 0
    %252 = vmatpush2.bf16.msra.mxu0 0
    %253 = vmatprep.subr.bf16.mxu0 0
    %254 = vmatpush2.bf16.msra.mxu0 0
    %255 = vmatprep.subr.bf16.mxu0 0
    %256 = vmatpush2.bf16.msra.mxu0 0
    %257 = vmatprep.subr.bf16.mxu0 0
    %258 = vmatpush2.bf16.msra.mxu0 0
    %259 = vmatprep.subr.bf16.mxu0 0
    %260 = vmatpush2.bf16.msra.mxu0 0
    %261 = vmatprep.mubr.bf16.mxu0 0
    %262 = vmatmul.mubr.bf16.gmra.mxu0 %v100
    %v263 = vpop.f32.mrf.mxu0
    %v264 = vadd.f32 0.0, %v263
    %v265 = vpop.f32.mrf.mxu0
    %v266 = vadd.f32 0.0, %v265
    %v267 = vpop.f32.mrf.mxu0
    %v268 = vpop.f32.mrf.mxu0
    %269 = vdwg.mxu0
    %270 = vmatprep.subr.bf16.mxu0 0
    %271 = vmatpush1.bf16.msra.mxu0 %v204
    %272 = vmatprep.subr.bf16.mxu0 0
    %273 = vmatpush1.bf16.msra.mxu0 %v201
    %274 = vmatprep.subr.bf16.mxu0 0
    %275 = vmatpush1.bf16.msra.mxu0 %v198
    %276 = vmatprep.subr.bf16.mxu0 0
    %277 = vmatpush1.bf16.msra.mxu0 %v195
    %278 = vmatprep.subr.bf16.mxu0 0
    %279 = vmatpush1.bf16.msra.mxu0 %v192
    %280 = vmatprep.subr.bf16.mxu0 0
    %281 = vmatpush1.bf16.msra.mxu0 %v189
    %282 = vmatprep.subr.bf16.mxu0 0
    %283 = vmatpush1.bf16.msra.mxu0 %v186
    %284 = vmatprep.subr.bf16.mxu0 0
    %285 = vmatpush1.bf16.msra.mxu0 %v183
    %286 = vmatprep.subr.bf16.mxu0 0
    %287 = vmatpush2.bf16.msra.mxu0 0
    %288 = vmatprep.subr.bf16.mxu0 0
    %289 = vmatpush2.bf16.msra.mxu0 0
    %290 = vmatprep.subr.bf16.mxu0 0
    %291 = vmatpush2.bf16.msra.mxu0 0
    %292 = vmatprep.subr.bf16.mxu0 0
    %293 = vmatpush2.bf16.msra.mxu0 0
    %294 = vmatprep.subr.bf16.mxu0 0
    %295 = vmatpush2.bf16.msra.mxu0 0
    %296 = vmatprep.subr.bf16.mxu0 0
    %297 = vmatpush2.bf16.msra.mxu0 0
    %298 = vmatprep.subr.bf16.mxu0 0
    %299 = vmatpush2.bf16.msra.mxu0 0
    %300 = vmatprep.subr.bf16.mxu0 0
    %301 = vmatpush2.bf16.msra.mxu0 0
    %302 = vmatprep.mubr.bf16.mxu0 0
    %303 = vmatmul.mubr.bf16.gmra.mxu0 %v100
    %v304 = vpop.f32.mrf.mxu0
    %v305 = vadd.f32 0.0, %v304
    %v306 = vpop.f32.mrf.mxu0
    %v307 = vpop.f32.mrf.mxu0
    %v308 = vpop.f32.mrf.mxu0
    %309 = vdwg.mxu0
    %v310 = vadd.f32 %v97, %v264
    %v311 = vadd.f32 %v98, %v266
    %v312 = vxor.u32 %v310, 2147483648
    %v313 = vxor.u32 %v311, 2147483648
    %v314 = vmul.f32 %v312, 1.442695
    %v315 = vpow.pop %v314
    %v316 = vmul.f32 %v313, 1.442695
    %v317 = vpow.pop %v316
    %v318 = vadd.f32 %v315, 1.0
    %v319 = vadd.f32 %v317, 1.0
    %v320 = vrcp.pop %v318
    %v321 = vmul.f32 1.0, %v320
    %v322 = vrcp.pop %v319
    %v323 = vmul.f32 1.0, %v322
    %v324 = vadd.f32 %v305, %v92
    %v325 = vmul.f32 %v321, %v324
    %v326 = vadd.f32 %v99, %v325
    %v327 = vtanh.pop %v326
    %v328 = vsub.f32 %v94, %v327
    %v329 = vmul.f32 %v323, %v328
    %v330 = vadd.f32 %v327, %v329
    %v331 = vld [vmem:[%s1] sm:$0xff]
    %v332 = vsub.f32 %v330, %v94
    %334 = vset.pattern.permute.xlu0 0
    %335 = vperm.xlu0 %334, %v331
    %v336 = vpop.permute.xlu0 %335
    %v338 = vmul.f32 %v336, %v332
    %v339 = vadd.f32 %v94, %v338
    %v340 = vmul.f32 %v336, %v330
    %v342 = vcombine.high %v340, %v340
    %v344 = vunpack.c.l.s4 1966171168
    %v345 = vunpack.c.0.s8 %v344
    %v346 = vlaneseq
    %v347 = vshrl.u32 %v346, 7
    %v348 = vsub.s32 %v345, %v347
    %v349 = vrot.slane %v340, %v348
    %v351 = vunpack.c.l.s4 1966171168
    %v352 = vunpack.c.0.s8 %v351
    %v353 = vlaneseq
    %v354 = vshrl.u32 %v353, 7
    %v355 = vsub.s32 %v352, %v354
    %v356 = vrot.slane %v342, %v355
    %v357 = vcombine.high %v349, %v349
    %v358 = vcombine.high %v356, %v356
    %v360 = vunpack.c.l.s4 1966171168
    %v361 = vunpack.c.0.s8 %v360
    %v362 = vlaneseq
    %v363 = vshrl.u32 %v362, 7
    %v364 = vsub.s32 %v361, %v363
    %v365 = vrot.slane %v349, %v364
    %v367 = vunpack.c.l.s4 1966171168
    %v368 = vunpack.c.0.s8 %v367
    %v369 = vlaneseq
    %v370 = vshrl.u32 %v369, 7
    %v371 = vsub.s32 %v368, %v370
    %v372 = vrot.slane %v356, %v371
    %v374 = vunpack.c.l.s4 1966171168
    %v375 = vunpack.c.0.s8 %v374
    %v376 = vlaneseq
    %v377 = vshrl.u32 %v376, 7
    %v378 = vsub.s32 %v375, %v377
    %v379 = vrot.slane %v357, %v378
    %v381 = vunpack.c.l.s4 1966171168
    %v382 = vunpack.c.0.s8 %v381
    %v383 = vlaneseq
    %v384 = vshrl.u32 %v383, 7
    %v385 = vsub.s32 %v382, %v384
    %v386 = vrot.slane %v358, %v385
    %v387 = vcombine.high %v365, %v365
    %v388 = vcombine.high %v372, %v372
    %v389 = vcombine.high %v379, %v379
    %v390 = vcombine.high %v386, %v386
    %399 = vst [vmem:[#allocation8] sm:$0x1] %v365
    %400 = vst [vmem:[#allocation8 + $0x8] sm:$0x1] %v379
    %401 = vst [vmem:[#allocation8 + $0x10] sm:$0x1] %v387
    %402 = vst [vmem:[#allocation8 + $0x18] sm:$0x1] %v389
    %403 = vst [vmem:[#allocation8 + $0x20] sm:$0x1] %v372
    %404 = vst [vmem:[#allocation8 + $0x28] sm:$0x1] %v386
    %405 = vst [vmem:[#allocation8 + $0x30] sm:$0x1] %v388
    %406 = vst [vmem:[#allocation8 + $0x38] sm:$0x1] %v390
    %s407 = scalar_lea.vmem [#allocation3], 12
    %v408 = vld [vmem:[%s407] sm:$0xff]
    %v409 = vld [vmem:[%s407 + $0x8] sm:$0xf]
    %v410 = vunpack.c.l.bf16 %v408
    %v411 = vunpack.c.h.bf16 %v408
    %v412 = vunpack.c.l.bf16 %v409
    %v413 = vpack.c.bf16 %v339, %v339
    %414 = vmatprep.subr.bf16.mxu0 %v203
    %415 = vmatpush1.bf16.msra.mxu0 %v202
    %416 = vmatprep.subr.bf16.mxu0 %v200
    %417 = vmatpush1.bf16.msra.mxu0 %v199
    %418 = vmatprep.subr.bf16.mxu0 %v197
    %419 = vmatpush1.bf16.msra.mxu0 %v196
    %420 = vmatprep.subr.bf16.mxu0 %v194
    %421 = vmatpush1.bf16.msra.mxu0 %v193
    %422 = vmatprep.subr.bf16.mxu0 %v191
    %423 = vmatpush1.bf16.msra.mxu0 %v190
    %424 = vmatprep.subr.bf16.mxu0 %v188
    %425 = vmatpush1.bf16.msra.mxu0 %v187
    %426 = vmatprep.subr.bf16.mxu0 %v185
    %427 = vmatpush1.bf16.msra.mxu0 %v184
    %428 = vmatprep.subr.bf16.mxu0 %v182
    %429 = vmatpush1.bf16.msra.mxu0 %v181
    %430 = vmatprep.subr.bf16.mxu0 0
    %431 = vmatpush2.bf16.msra.mxu0 0
    %432 = vmatprep.subr.bf16.mxu0 0
    %433 = vmatpush2.bf16.msra.mxu0 0
    %434 = vmatprep.subr.bf16.mxu0 0
    %435 = vmatpush2.bf16.msra.mxu0 0
    %436 = vmatprep.subr.bf16.mxu0 0
    %437 = vmatpush2.bf16.msra.mxu0 0
    %438 = vmatprep.subr.bf16.mxu0 0
    %439 = vmatpush2.bf16.msra.mxu0 0
    %440 = vmatprep.subr.bf16.mxu0 0
    %441 = vmatpush2.bf16.msra.mxu0 0
    %442 = vmatprep.subr.bf16.mxu0 0
    %443 = vmatpush2.bf16.msra.mxu0 0
    %444 = vmatprep.subr.bf16.mxu0 0
    %445 = vmatpush2.bf16.msra.mxu0 0
    %446 = vmatprep.mubr.bf16.mxu0 0
    %447 = vmatmul.mubr.bf16.gmra.mxu0 %v413
    %v448 = vpop.f32.mrf.mxu0
    %v449 = vadd.f32 0.0, %v448
    %v450 = vpop.f32.mrf.mxu0
    %v451 = vadd.f32 0.0, %v450
    %v452 = vpop.f32.mrf.mxu0
    %v453 = vpop.f32.mrf.mxu0
    %454 = vdwg.mxu0
    %455 = vmatprep.subr.bf16.mxu0 0
    %456 = vmatpush1.bf16.msra.mxu0 %v204
    %457 = vmatprep.subr.bf16.mxu0 0
    %458 = vmatpush1.bf16.msra.mxu0 %v201
    %459 = vmatprep.subr.bf16.mxu0 0
    %460 = vmatpush1.bf16.msra.mxu0 %v198
    %461 = vmatprep.subr.bf16.mxu0 0
    %462 = vmatpush1.bf16.msra.mxu0 %v195
    %463 = vmatprep.subr.bf16.mxu0 0
    %464 = vmatpush1.bf16.msra.mxu0 %v192
    %465 = vmatprep.subr.bf16.mxu0 0
    %466 = vmatpush1.bf16.msra.mxu0 %v189
    %467 = vmatprep.subr.bf16.mxu0 0
    %468 = vmatpush1.bf16.msra.mxu0 %v186
    %469 = vmatprep.subr.bf16.mxu0 0
    %470 = vmatpush1.bf16.msra.mxu0 %v183
    %471 = vmatprep.subr.bf16.mxu0 0
    %472 = vmatpush2.bf16.msra.mxu0 0
    %473 = vmatprep.subr.bf16.mxu0 0
    %474 = vmatpush2.bf16.msra.mxu0 0
    %475 = vmatprep.subr.bf16.mxu0 0
    %476 = vmatpush2.bf16.msra.mxu0 0
    %477 = vmatprep.subr.bf16.mxu0 0
    %478 = vmatpush2.bf16.msra.mxu0 0
    %479 = vmatprep.subr.bf16.mxu0 0
    %480 = vmatpush2.bf16.msra.mxu0 0
    %481 = vmatprep.subr.bf16.mxu0 0
    %482 = vmatpush2.bf16.msra.mxu0 0
    %483 = vmatprep.subr.bf16.mxu0 0
    %484 = vmatpush2.bf16.msra.mxu0 0
    %485 = vmatprep.subr.bf16.mxu0 0
    %486 = vmatpush2.bf16.msra.mxu0 0
    %487 = vmatprep.mubr.bf16.mxu0 0
    %488 = vmatmul.mubr.bf16.gmra.mxu0 %v413
    %v489 = vpop.f32.mrf.mxu0
    %v490 = vadd.f32 0.0, %v489
    %v491 = vpop.f32.mrf.mxu0
    %v492 = vpop.f32.mrf.mxu0
    %v493 = vpop.f32.mrf.mxu0
    %494 = vdwg.mxu0
    %v495 = vadd.f32 %v410, %v449
    %v496 = vadd.f32 %v411, %v451
    %v497 = vxor.u32 %v495, 2147483648
    %v498 = vxor.u32 %v496, 2147483648
    %v499 = vmul.f32 %v497, 1.442695
    %v500 = vpow.pop %v499
    %v501 = vmul.f32 %v498, 1.442695
    %v502 = vpow.pop %v501
    %v503 = vadd.f32 %v500, 1.0
    %v504 = vadd.f32 %v502, 1.0
    %v505 = vrcp.pop %v503
    %v506 = vmul.f32 1.0, %v505
    %v507 = vrcp.pop %v504
    %v508 = vmul.f32 1.0, %v507
    %v509 = vadd.f32 %v490, %v92
    %v510 = vmul.f32 %v506, %v509
    %v511 = vadd.f32 %v412, %v510
    %v512 = vtanh.pop %v511
    %v513 = vsub.f32 %v339, %v512
    %v514 = vmul.f32 %v508, %v513
    %v515 = vadd.f32 %v512, %v514
    %s516 = scalar_lea.vmem %s1, 8
    %v517 = vld [vmem:[%s516] sm:$0xff]
    %v518 = vsub.f32 %v515, %v339
    %520 = vset.pattern.permute.xlu0 0
    %521 = vperm.xlu0 %520, %v517
    %v522 = vpop.permute.xlu0 %521
    %v524 = vmul.f32 %v522, %v518
    %v525 = vadd.f32 %v339, %v524
    %v526 = vmul.f32 %v522, %v515
    %v528 = vcombine.high %v526, %v526
    %v530 = vunpack.c.l.s4 1966171168
    %v531 = vunpack.c.0.s8 %v530
    %v532 = vlaneseq
    %v533 = vshrl.u32 %v532, 7
    %v534 = vsub.s32 %v531, %v533
    %v535 = vrot.slane %v526, %v534
    %v537 = vunpack.c.l.s4 1966171168
    %v538 = vunpack.c.0.s8 %v537
    %v539 = vlaneseq
    %v540 = vshrl.u32 %v539, 7
    %v541 = vsub.s32 %v538, %v540
    %v542 = vrot.slane %v528, %v541
    %v543 = vcombine.high %v535, %v535
    %v544 = vcombine.high %v542, %v542
    %v546 = vunpack.c.l.s4 1966171168
    %v547 = vunpack.c.0.s8 %v546
    %v548 = vlaneseq
    %v549 = vshrl.u32 %v548, 7
    %v550 = vsub.s32 %v547, %v549
    %v551 = vrot.slane %v535, %v550
    %v553 = vunpack.c.l.s4 1966171168
    %v554 = vunpack.c.0.s8 %v553
    %v555 = vlaneseq
    %v556 = vshrl.u32 %v555, 7
    %v557 = vsub.s32 %v554, %v556
    %v558 = vrot.slane %v542, %v557
    %v560 = vunpack.c.l.s4 1966171168
    %v561 = vunpack.c.0.s8 %v560
    %v562 = vlaneseq
    %v563 = vshrl.u32 %v562, 7
    %v564 = vsub.s32 %v561, %v563
    %v565 = vrot.slane %v543, %v564
    %v567 = vunpack.c.l.s4 1966171168
    %v568 = vunpack.c.0.s8 %v567
    %v569 = vlaneseq
    %v570 = vshrl.u32 %v569, 7
    %v571 = vsub.s32 %v568, %v570
    %v572 = vrot.slane %v544, %v571
    %v573 = vcombine.high %v551, %v551
    %v574 = vcombine.high %v558, %v558
    %v575 = vcombine.high %v565, %v565
    %v576 = vcombine.high %v572, %v572
    %585 = vst [vmem:[#allocation8 + $0x1] sm:$0x1] %v551
    %586 = vst [vmem:[#allocation8 + $0x9] sm:$0x1] %v565
    %587 = vst [vmem:[#allocation8 + $0x11] sm:$0x1] %v573
    %588 = vst [vmem:[#allocation8 + $0x19] sm:$0x1] %v575
    %589 = vst [vmem:[#allocation8 + $0x21] sm:$0x1] %v558
    %590 = vst [vmem:[#allocation8 + $0x29] sm:$0x1] %v572
    %591 = vst [vmem:[#allocation8 + $0x31] sm:$0x1] %v574
    %592 = vst [vmem:[#allocation8 + $0x39] sm:$0x1] %v576
    %s593 = scalar_lea.vmem [#allocation3], 24
    %v594 = vld [vmem:[%s593] sm:$0xff]
    %v595 = vld [vmem:[%s593 + $0x8] sm:$0xf]
    %v596 = vunpack.c.l.bf16 %v594
    %v597 = vunpack.c.h.bf16 %v594
    %v598 = vunpack.c.l.bf16 %v595
    %v599 = vpack.c.bf16 %v525, %v525
    %600 = vmatprep.subr.bf16.mxu0 %v203
    %601 = vmatpush1.bf16.msra.mxu0 %v202
    %602 = vmatprep.subr.bf16.mxu0 %v200
    %603 = vmatpush1.bf16.msra.mxu0 %v199
    %604 = vmatprep.subr.bf16.mxu0 %v197
    %605 = vmatpush1.bf16.msra.mxu0 %v196
    %606 = vmatprep.subr.bf16.mxu0 %v194
    %607 = vmatpush1.bf16.msra.mxu0 %v193
    %608 = vmatprep.subr.bf16.mxu0 %v191
    %609 = vmatpush1.bf16.msra.mxu0 %v190
    %610 = vmatprep.subr.bf16.mxu0 %v188
    %611 = vmatpush1.bf16.msra.mxu0 %v187
    %612 = vmatprep.subr.bf16.mxu0 %v185
    %613 = vmatpush1.bf16.msra.mxu0 %v184
    %614 = vmatprep.subr.bf16.mxu0 %v182
    %615 = vmatpush1.bf16.msra.mxu0 %v181
    %616 = vmatprep.subr.bf16.mxu0 0
    %617 = vmatpush2.bf16.msra.mxu0 0
    %618 = vmatprep.subr.bf16.mxu0 0
    %619 = vmatpush2.bf16.msra.mxu0 0
    %620 = vmatprep.subr.bf16.mxu0 0
    %621 = vmatpush2.bf16.msra.mxu0 0
    %622 = vmatprep.subr.bf16.mxu0 0
    %623 = vmatpush2.bf16.msra.mxu0 0
    %624 = vmatprep.subr.bf16.mxu0 0
    %625 = vmatpush2.bf16.msra.mxu0 0
    %626 = vmatprep.subr.bf16.mxu0 0
    %627 = vmatpush2.bf16.msra.mxu0 0
    %628 = vmatprep.subr.bf16.mxu0 0
    %629 = vmatpush2.bf16.msra.mxu0 0
    %630 = vmatprep.subr.bf16.mxu0 0
    %631 = vmatpush2.bf16.msra.mxu0 0
    %632 = vmatprep.mubr.bf16.mxu0 0
    %633 = vmatmul.mubr.bf16.gmra.mxu0 %v599
    %v634 = vpop.f32.mrf.mxu0
    %v635 = vadd.f32 0.0, %v634
    %v636 = vpop.f32.mrf.mxu0
    %v637 = vadd.f32 0.0, %v636
    %v638 = vpop.f32.mrf.mxu0
    %v639 = vpop.f32.mrf.mxu0
    %640 = vdwg.mxu0
    %641 = vmatprep.subr.bf16.mxu0 0
    %642 = vmatpush1.bf16.msra.mxu0 %v204
    %643 = vmatprep.subr.bf16.mxu0 0
    %644 = vmatpush1.bf16.msra.mxu0 %v201
    %645 = vmatprep.subr.bf16.mxu0 0
    %646 = vmatpush1.bf16.msra.mxu0 %v198
    %647 = vmatprep.subr.bf16.mxu0 0
    %648 = vmatpush1.bf16.msra.mxu0 %v195
    %649 = vmatprep.subr.bf16.mxu0 0
    %650 = vmatpush1.bf16.msra.mxu0 %v192
    %651 = vmatprep.subr.bf16.mxu0 0
    %652 = vmatpush1.bf16.msra.mxu0 %v189
    %653 = vmatprep.subr.bf16.mxu0 0
    %654 = vmatpush1.bf16.msra.mxu0 %v186
    %655 = vmatprep.subr.bf16.mxu0 0
    %656 = vmatpush1.bf16.msra.mxu0 %v183
    %657 = vmatprep.subr.bf16.mxu0 0
    %658 = vmatpush2.bf16.msra.mxu0 0
    %659 = vmatprep.subr.bf16.mxu0 0
    %660 = vmatpush2.bf16.msra.mxu0 0
    %661 = vmatprep.subr.bf16.mxu0 0
    %662 = vmatpush2.bf16.msra.mxu0 0
    %663 = vmatprep.subr.bf16.mxu0 0
    %664 = vmatpush2.bf16.msra.mxu0 0
    %665 = vmatprep.subr.bf16.mxu0 0
    %666 = vmatpush2.bf16.msra.mxu0 0
    %667 = vmatprep.subr.bf16.mxu0 0
    %668 = vmatpush2.bf16.msra.mxu0 0
    %669 = vmatprep.subr.bf16.mxu0 0
    %670 = vmatpush2.bf16.msra.mxu0 0
    %671 = vmatprep.subr.bf16.mxu0 0
    %672 = vmatpush2.bf16.msra.mxu0 0
    %673 = vmatprep.mubr.bf16.mxu0 0
    %674 = vmatmul.mubr.bf16.gmra.mxu0 %v599
    %v675 = vpop.f32.mrf.mxu0
    %v676 = vadd.f32 0.0, %v675
    %v677 = vpop.f32.mrf.mxu0
    %v678 = vpop.f32.mrf.mxu0
    %v679 = vpop.f32.mrf.mxu0
    %680 = vdwg.mxu0
    %v681 = vadd.f32 %v596, %v635
    %v682 = vadd.f32 %v597, %v637
    %v683 = vxor.u32 %v681, 2147483648
    %v684 = vxor.u32 %v682, 2147483648
    %v685 = vmul.f32 %v683, 1.442695
    %v686 = vpow.pop %v685
    %v687 = vmul.f32 %v684, 1.442695
    %v688 = vpow.pop %v687
    %v689 = vadd.f32 %v686, 1.0
    %v690 = vadd.f32 %v688, 1.0
    %v691 = vrcp.pop %v689
    %v692 = vmul.f32 1.0, %v691
    %v693 = vrcp.pop %v690
    %v694 = vmul.f32 1.0, %v693
    %v695 = vadd.f32 %v676, %v92
    %v696 = vmul.f32 %v692, %v695
    %v697 = vadd.f32 %v598, %v696
    %v698 = vtanh.pop %v697
    %v699 = vsub.f32 %v525, %v698
    %v700 = vmul.f32 %v694, %v699
    %v701 = vadd.f32 %v698, %v700
    %s702 = scalar_lea.vmem %s1, 16
    %v703 = vld [vmem:[%s702] sm:$0xff]
    %v704 = vsub.f32 %v701, %v525
    %706 = vset.pattern.permute.xlu0 0
    %707 = vperm.xlu0 %706, %v703
    %v708 = vpop.permute.xlu0 %707
    %v710 = vmul.f32 %v708, %v704
    %v711 = vadd.f32 %v525, %v710
    %v712 = vmul.f32 %v708, %v701
    %v714 = vcombine.high %v712, %v712
    %v716 = vunpack.c.l.s4 1966171168
    %v717 = vunpack.c.0.s8 %v716
    %v718 = vlaneseq
    %v719 = vshrl.u32 %v718, 7
    %v720 = vsub.s32 %v717, %v719
    %v721 = vrot.slane %v712, %v720
    %v723 = vunpack.c.l.s4 1966171168
    %v724 = vunpack.c.0.s8 %v723
    %v725 = vlaneseq
    %v726 = vshrl.u32 %v725, 7
    %v727 = vsub.s32 %v724, %v726
    %v728 = vrot.slane %v714, %v727
    %v729 = vcombine.high %v721, %v721
    %v730 = vcombine.high %v728, %v728
    %v732 = vunpack.c.l.s4 1966171168
    %v733 = vunpack.c.0.s8 %v732
    %v734 = vlaneseq
    %v735 = vshrl.u32 %v734, 7
    %v736 = vsub.s32 %v733, %v735
    %v737 = vrot.slane %v721, %v736
    %v739 = vunpack.c.l.s4 1966171168
    %v740 = vunpack.c.0.s8 %v739
    %v741 = vlaneseq
    %v742 = vshrl.u32 %v741, 7
    %v743 = vsub.s32 %v740, %v742
    %v744 = vrot.slane %v728, %v743
    %v746 = vunpack.c.l.s4 1966171168
    %v747 = vunpack.c.0.s8 %v746
    %v748 = vlaneseq
    %v749 = vshrl.u32 %v748, 7
    %v750 = vsub.s32 %v747, %v749
    %v751 = vrot.slane %v729, %v750
    %v753 = vunpack.c.l.s4 1966171168
    %v754 = vunpack.c.0.s8 %v753
    %v755 = vlaneseq
    %v756 = vshrl.u32 %v755, 7
    %v757 = vsub.s32 %v754, %v756
    %v758 = vrot.slane %v730, %v757
    %v759 = vcombine.high %v737, %v737
    %v760 = vcombine.high %v744, %v744
    %v761 = vcombine.high %v751, %v751
    %v762 = vcombine.high %v758, %v758
    %771 = vst [vmem:[#allocation8 + $0x2] sm:$0x1] %v737
    %772 = vst [vmem:[#allocation8 + $0xa] sm:$0x1] %v751
    %773 = vst [vmem:[#allocation8 + $0x12] sm:$0x1] %v759
    %774 = vst [vmem:[#allocation8 + $0x1a] sm:$0x1] %v761
    %775 = vst [vmem:[#allocation8 + $0x22] sm:$0x1] %v744
    %776 = vst [vmem:[#allocation8 + $0x2a] sm:$0x1] %v758
    %777 = vst [vmem:[#allocation8 + $0x32] sm:$0x1] %v760
    %778 = vst [vmem:[#allocation8 + $0x3a] sm:$0x1] %v762
    %s779 = scalar_lea.vmem [#allocation3], 36
    %v780 = vld [vmem:[%s779] sm:$0xff]
    %v781 = vld [vmem:[%s779 + $0x8] sm:$0xf]
    %v782 = vunpack.c.l.bf16 %v780
    %v783 = vunpack.c.h.bf16 %v780
    %v784 = vunpack.c.l.bf16 %v781
    %v785 = vpack.c.bf16 %v711, %v711
    %786 = vmatprep.subr.bf16.mxu0 %v203
    %787 = vmatpush1.bf16.msra.mxu0 %v202
    %788 = vmatprep.subr.bf16.mxu0 %v200
    %789 = vmatpush1.bf16.msra.mxu0 %v199
    %790 = vmatprep.subr.bf16.mxu0 %v197
    %791 = vmatpush1.bf16.msra.mxu0 %v196
    %792 = vmatprep.subr.bf16.mxu0 %v194
    %793 = vmatpush1.bf16.msra.mxu0 %v193
    %794 = vmatprep.subr.bf16.mxu0 %v191
    %795 = vmatpush1.bf16.msra.mxu0 %v190
    %796 = vmatprep.subr.bf16.mxu0 %v188
    %797 = vmatpush1.bf16.msra.mxu0 %v187
    %798 = vmatprep.subr.bf16.mxu0 %v185
    %799 = vmatpush1.bf16.msra.mxu0 %v184
    %800 = vmatprep.subr.bf16.mxu0 %v182
    %801 = vmatpush1.bf16.msra.mxu0 %v181
    %802 = vmatprep.subr.bf16.mxu0 0
    %803 = vmatpush2.bf16.msra.mxu0 0
    %804 = vmatprep.subr.bf16.mxu0 0
    %805 = vmatpush2.bf16.msra.mxu0 0
    %806 = vmatprep.subr.bf16.mxu0 0
    %807 = vmatpush2.bf16.msra.mxu0 0
    %808 = vmatprep.subr.bf16.mxu0 0
    %809 = vmatpush2.bf16.msra.mxu0 0
    %810 = vmatprep.subr.bf16.mxu0 0
    %811 = vmatpush2.bf16.msra.mxu0 0
    %812 = vmatprep.subr.bf16.mxu0 0
    %813 = vmatpush2.bf16.msra.mxu0 0
    %814 = vmatprep.subr.bf16.mxu0 0
    %815 = vmatpush2.bf16.msra.mxu0 0
    %816 = vmatprep.subr.bf16.mxu0 0
    %817 = vmatpush2.bf16.msra.mxu0 0
    %818 = vmatprep.mubr.bf16.mxu0 0
    %819 = vmatmul.mubr.bf16.gmra.mxu0 %v785
    %v820 = vpop.f32.mrf.mxu0
    %v821 = vadd.f32 0.0, %v820
    %v822 = vpop.f32.mrf.mxu0
    %v823 = vadd.f32 0.0, %v822
    %v824 = vpop.f32.mrf.mxu0
    %v825 = vpop.f32.mrf.mxu0
    %826 = vdwg.mxu0
    %827 = vmatprep.subr.bf16.mxu0 0
    %828 = vmatpush1.bf16.msra.mxu0 %v204
    %829 = vmatprep.subr.bf16.mxu0 0
    %830 = vmatpush1.bf16.msra.mxu0 %v201
    %831 = vmatprep.subr.bf16.mxu0 0
    %832 = vmatpush1.bf16.msra.mxu0 %v198
    %833 = vmatprep.subr.bf16.mxu0 0
    %834 = vmatpush1.bf16.msra.mxu0 %v195
    %835 = vmatprep.subr.bf16.mxu0 0
    %836 = vmatpush1.bf16.msra.mxu0 %v192
    %837 = vmatprep.subr.bf16.mxu0 0
    %838 = vmatpush1.bf16.msra.mxu0 %v189
    %839 = vmatprep.subr.bf16.mxu0 0
    %840 = vmatpush1.bf16.msra.mxu0 %v186
    %841 = vmatprep.subr.bf16.mxu0 0
    %842 = vmatpush1.bf16.msra.mxu0 %v183
    %843 = vmatprep.subr.bf16.mxu0 0
    %844 = vmatpush2.bf16.msra.mxu0 0
    %845 = vmatprep.subr.bf16.mxu0 0
    %846 = vmatpush2.bf16.msra.mxu0 0
    %847 = vmatprep.subr.bf16.mxu0 0
    %848 = vmatpush2.bf16.msra.mxu0 0
    %849 = vmatprep.subr.bf16.mxu0 0
    %850 = vmatpush2.bf16.msra.mxu0 0
    %851 = vmatprep.subr.bf16.mxu0 0
    %852 = vmatpush2.bf16.msra.mxu0 0
    %853 = vmatprep.subr.bf16.mxu0 0
    %854 = vmatpush2.bf16.msra.mxu0 0
    %855 = vmatprep.subr.bf16.mxu0 0
    %856 = vmatpush2.bf16.msra.mxu0 0
    %857 = vmatprep.subr.bf16.mxu0 0
    %858 = vmatpush2.bf16.msra.mxu0 0
    %859 = vmatprep.mubr.bf16.mxu0 0
    %860 = vmatmul.mubr.bf16.gmra.mxu0 %v785
    %v861 = vpop.f32.mrf.mxu0
    %v862 = vadd.f32 0.0, %v861
    %v863 = vpop.f32.mrf.mxu0
    %v864 = vpop.f32.mrf.mxu0
    %v865 = vpop.f32.mrf.mxu0
    %866 = vdwg.mxu0
    %v867 = vadd.f32 %v782, %v821
    %v868 = vadd.f32 %v783, %v823
    %v869 = vxor.u32 %v867, 2147483648
    %v870 = vxor.u32 %v868, 2147483648
    %v871 = vmul.f32 %v869, 1.442695
    %v872 = vpow.pop %v871
    %v873 = vmul.f32 %v870, 1.442695
    %v874 = vpow.pop %v873
    %v875 = vadd.f32 %v872, 1.0
    %v876 = vadd.f32 %v874, 1.0
    %v877 = vrcp.pop %v875
    %v878 = vmul.f32 1.0, %v877
    %v879 = vrcp.pop %v876
    %v880 = vmul.f32 1.0, %v879
    %v881 = vadd.f32 %v862, %v92
    %v882 = vmul.f32 %v878, %v881
    %v883 = vadd.f32 %v784, %v882
    %v884 = vtanh.pop %v883
    %v885 = vsub.f32 %v711, %v884
    %v886 = vmul.f32 %v880, %v885
    %v887 = vadd.f32 %v884, %v886
    %s888 = scalar_lea.vmem %s1, 24
    %v889 = vld [vmem:[%s888] sm:$0xff]
    %v890 = vsub.f32 %v887, %v711
    %892 = vset.pattern.permute.xlu0 0
    %893 = vperm.xlu0 %892, %v889
    %v894 = vpop.permute.xlu0 %893
    %v896 = vmul.f32 %v894, %v890
    %v897 = vadd.f32 %v711, %v896
    %v898 = vmul.f32 %v894, %v887
    %v900 = vcombine.high %v898, %v898
    %v902 = vunpack.c.l.s4 1966171168
    %v903 = vunpack.c.0.s8 %v902
    %v904 = vlaneseq
    %v905 = vshrl.u32 %v904, 7
    %v906 = vsub.s32 %v903, %v905
    %v907 = vrot.slane %v898, %v906
    %v909 = vunpack.c.l.s4 1966171168
    %v910 = vunpack.c.0.s8 %v909
    %v911 = vlaneseq
    %v912 = vshrl.u32 %v911, 7
    %v913 = vsub.s32 %v910, %v912
    %v914 = vrot.slane %v900, %v913
    %v915 = vcombine.high %v907, %v907
    %v916 = vcombine.high %v914, %v914
    %v918 = vunpack.c.l.s4 1966171168
    %v919 = vunpack.c.0.s8 %v918
    %v920 = vlaneseq
    %v921 = vshrl.u32 %v920, 7
    %v922 = vsub.s32 %v919, %v921
    %v923 = vrot.slane %v907, %v922
    %v925 = vunpack.c.l.s4 1966171168
    %v926 = vunpack.c.0.s8 %v925
    %v927 = vlaneseq
    %v928 = vshrl.u32 %v927, 7
    %v929 = vsub.s32 %v926, %v928
    %v930 = vrot.slane %v914, %v929
    %v932 = vunpack.c.l.s4 1966171168
    %v933 = vunpack.c.0.s8 %v932
    %v934 = vlaneseq
    %v935 = vshrl.u32 %v934, 7
    %v936 = vsub.s32 %v933, %v935
    %v937 = vrot.slane %v915, %v936
    %v939 = vunpack.c.l.s4 1966171168
    %v940 = vunpack.c.0.s8 %v939
    %v941 = vlaneseq
    %v942 = vshrl.u32 %v941, 7
    %v943 = vsub.s32 %v940, %v942
    %v944 = vrot.slane %v916, %v943
    %v945 = vcombine.high %v923, %v923
    %v946 = vcombine.high %v930, %v930
    %v947 = vcombine.high %v937, %v937
    %v948 = vcombine.high %v944, %v944
    %957 = vst [vmem:[#allocation8 + $0x3] sm:$0x1] %v923
    %958 = vst [vmem:[#allocation8 + $0xb] sm:$0x1] %v937
    %959 = vst [vmem:[#allocation8 + $0x13] sm:$0x1] %v945
    %960 = vst [vmem:[#allocation8 + $0x1b] sm:$0x1] %v947
    %961 = vst [vmem:[#allocation8 + $0x23] sm:$0x1] %v930
    %962 = vst [vmem:[#allocation8 + $0x2b] sm:$0x1] %v944
    %963 = vst [vmem:[#allocation8 + $0x33] sm:$0x1] %v946
    %964 = vst [vmem:[#allocation8 + $0x3b] sm:$0x1] %v948
    %s965 = scalar_lea.vmem [#allocation3], 48
    %v966 = vld [vmem:[%s965] sm:$0xff]
    %v967 = vld [vmem:[%s965 + $0x8] sm:$0xf]
    %v968 = vunpack.c.l.bf16 %v966
    %v969 = vunpack.c.h.bf16 %v966
    %v970 = vunpack.c.l.bf16 %v967
    %v971 = vpack.c.bf16 %v897, %v897
    %972 = vmatprep.subr.bf16.mxu0 %v203
    %973 = vmatpush1.bf16.msra.mxu0 %v202
    %974 = vmatprep.subr.bf16.mxu0 %v200
    %975 = vmatpush1.bf16.msra.mxu0 %v199
    %976 = vmatprep.subr.bf16.mxu0 %v197
    %977 = vmatpush1.bf16.msra.mxu0 %v196
    %978 = vmatprep.subr.bf16.mxu0 %v194
    %979 = vmatpush1.bf16.msra.mxu0 %v193
    %980 = vmatprep.subr.bf16.mxu0 %v191
    %981 = vmatpush1.bf16.msra.mxu0 %v190
    %982 = vmatprep.subr.bf16.mxu0 %v188
    %983 = vmatpush1.bf16.msra.mxu0 %v187
    %984 = vmatprep.subr.bf16.mxu0 %v185
    %985 = vmatpush1.bf16.msra.mxu0 %v184
    %986 = vmatprep.subr.bf16.mxu0 %v182
    %987 = vmatpush1.bf16.msra.mxu0 %v181
    %988 = vmatprep.subr.bf16.mxu0 0
    %989 = vmatpush2.bf16.msra.mxu0 0
    %990 = vmatprep.subr.bf16.mxu0 0
    %991 = vmatpush2.bf16.msra.mxu0 0
    %992 = vmatprep.subr.bf16.mxu0 0
    %993 = vmatpush2.bf16.msra.mxu0 0
    %994 = vmatprep.subr.bf16.mxu0 0
    %995 = vmatpush2.bf16.msra.mxu0 0
    %996 = vmatprep.subr.bf16.mxu0 0
    %997 = vmatpush2.bf16.msra.mxu0 0
    %998 = vmatprep.subr.bf16.mxu0 0
    %999 = vmatpush2.bf16.msra.mxu0 0
    %1000 = vmatprep.subr.bf16.mxu0 0
    %1001 = vmatpush2.bf16.msra.mxu0 0
    %1002 = vmatprep.subr.bf16.mxu0 0
    %1003 = vmatpush2.bf16.msra.mxu0 0
    %1004 = vmatprep.mubr.bf16.mxu0 0
    %1005 = vmatmul.mubr.bf16.gmra.mxu0 %v971
    %v1006 = vpop.f32.mrf.mxu0
    %v1007 = vadd.f32 0.0, %v1006
    %v1008 = vpop.f32.mrf.mxu0
    %v1009 = vadd.f32 0.0, %v1008
    %v1010 = vpop.f32.mrf.mxu0
    %v1011 = vpop.f32.mrf.mxu0
    %1012 = vdwg.mxu0
    %1013 = vmatprep.subr.bf16.mxu0 0
    %1014 = vmatpush1.bf16.msra.mxu0 %v204
    %1015 = vmatprep.subr.bf16.mxu0 0
    %1016 = vmatpush1.bf16.msra.mxu0 %v201
    %1017 = vmatprep.subr.bf16.mxu0 0
    %1018 = vmatpush1.bf16.msra.mxu0 %v198
    %1019 = vmatprep.subr.bf16.mxu0 0
    %1020 = vmatpush1.bf16.msra.mxu0 %v195
    %1021 = vmatprep.subr.bf16.mxu0 0
    %1022 = vmatpush1.bf16.msra.mxu0 %v192
    %1023 = vmatprep.subr.bf16.mxu0 0
    %1024 = vmatpush1.bf16.msra.mxu0 %v189
    %1025 = vmatprep.subr.bf16.mxu0 0
    %1026 = vmatpush1.bf16.msra.mxu0 %v186
    %1027 = vmatprep.subr.bf16.mxu0 0
    %1028 = vmatpush1.bf16.msra.mxu0 %v183
    %1029 = vmatprep.subr.bf16.mxu0 0
    %1030 = vmatpush2.bf16.msra.mxu0 0
    %1031 = vmatprep.subr.bf16.mxu0 0
    %1032 = vmatpush2.bf16.msra.mxu0 0
    %1033 = vmatprep.subr.bf16.mxu0 0
    %1034 = vmatpush2.bf16.msra.mxu0 0
    %1035 = vmatprep.subr.bf16.mxu0 0
    %1036 = vmatpush2.bf16.msra.mxu0 0
    %1037 = vmatprep.subr.bf16.mxu0 0
    %1038 = vmatpush2.bf16.msra.mxu0 0
    %1039 = vmatprep.subr.bf16.mxu0 0
    %1040 = vmatpush2.bf16.msra.mxu0 0
    %1041 = vmatprep.subr.bf16.mxu0 0
    %1042 = vmatpush2.bf16.msra.mxu0 0
    %1043 = vmatprep.subr.bf16.mxu0 0
    %1044 = vmatpush2.bf16.msra.mxu0 0
    %1045 = vmatprep.mubr.bf16.mxu0 0
    %1046 = vmatmul.mubr.bf16.gmra.mxu0 %v971
    %v1047 = vpop.f32.mrf.mxu0
    %v1048 = vadd.f32 0.0, %v1047
    %v1049 = vpop.f32.mrf.mxu0
    %v1050 = vpop.f32.mrf.mxu0
    %v1051 = vpop.f32.mrf.mxu0
    %1052 = vdwg.mxu0
    %v1053 = vadd.f32 %v968, %v1007
    %v1054 = vadd.f32 %v969, %v1009
    %v1055 = vxor.u32 %v1053, 2147483648
    %v1056 = vxor.u32 %v1054, 2147483648
    %v1057 = vmul.f32 %v1055, 1.442695
    %v1058 = vpow.pop %v1057
    %v1059 = vmul.f32 %v1056, 1.442695
    %v1060 = vpow.pop %v1059
    %v1061 = vadd.f32 %v1058, 1.0
    %v1062 = vadd.f32 %v1060, 1.0
    %v1063 = vrcp.pop %v1061
    %v1064 = vmul.f32 1.0, %v1063
    %v1065 = vrcp.pop %v1062
    %v1066 = vmul.f32 1.0, %v1065
    %v1067 = vadd.f32 %v1048, %v92
    %v1068 = vmul.f32 %v1064, %v1067
    %v1069 = vadd.f32 %v970, %v1068
    %v1070 = vtanh.pop %v1069
    %v1071 = vsub.f32 %v897, %v1070
    %v1072 = vmul.f32 %v1066, %v1071
    %v1073 = vadd.f32 %v1070, %v1072
    %s1074 = scalar_lea.vmem %s1, 32
    %v1075 = vld [vmem:[%s1074] sm:$0xff]
    %v1076 = vsub.f32 %v1073, %v897
    %1078 = vset.pattern.permute.xlu0 0
    %1079 = vperm.xlu0 %1078, %v1075
    %v1080 = vpop.permute.xlu0 %1079
    %v1082 = vmul.f32 %v1080, %v1076
    %v1083 = vadd.f32 %v897, %v1082
    %v1084 = vmul.f32 %v1080, %v1073
    %v1086 = vcombine.high %v1084, %v1084
    %v1088 = vunpack.c.l.s4 1966171168
    %v1089 = vunpack.c.0.s8 %v1088
    %v1090 = vlaneseq
    %v1091 = vshrl.u32 %v1090, 7
    %v1092 = vsub.s32 %v1089, %v1091
    %v1093 = vrot.slane %v1084, %v1092
    %v1095 = vunpack.c.l.s4 1966171168
    %v1096 = vunpack.c.0.s8 %v1095
    %v1097 = vlaneseq
    %v1098 = vshrl.u32 %v1097, 7
    %v1099 = vsub.s32 %v1096, %v1098
    %v1100 = vrot.slane %v1086, %v1099
    %v1101 = vcombine.high %v1093, %v1093
    %v1102 = vcombine.high %v1100, %v1100
    %v1104 = vunpack.c.l.s4 1966171168
    %v1105 = vunpack.c.0.s8 %v1104
    %v1106 = vlaneseq
    %v1107 = vshrl.u32 %v1106, 7
    %v1108 = vsub.s32 %v1105, %v1107
    %v1109 = vrot.slane %v1093, %v1108
    %v1111 = vunpack.c.l.s4 1966171168
    %v1112 = vunpack.c.0.s8 %v1111
    %v1113 = vlaneseq
    %v1114 = vshrl.u32 %v1113, 7
    %v1115 = vsub.s32 %v1112, %v1114
    %v1116 = vrot.slane %v1100, %v1115
    %v1118 = vunpack.c.l.s4 1966171168
    %v1119 = vunpack.c.0.s8 %v1118
    %v1120 = vlaneseq
    %v1121 = vshrl.u32 %v1120, 7
    %v1122 = vsub.s32 %v1119, %v1121
    %v1123 = vrot.slane %v1101, %v1122
    %v1125 = vunpack.c.l.s4 1966171168
    %v1126 = vunpack.c.0.s8 %v1125
    %v1127 = vlaneseq
    %v1128 = vshrl.u32 %v1127, 7
    %v1129 = vsub.s32 %v1126, %v1128
    %v1130 = vrot.slane %v1102, %v1129
    %v1131 = vcombine.high %v1109, %v1109
    %v1132 = vcombine.high %v1116, %v1116
    %v1133 = vcombine.high %v1123, %v1123
    %v1134 = vcombine.high %v1130, %v1130
    %1143 = vst [vmem:[#allocation8 + $0x4] sm:$0x1] %v1109
    %1144 = vst [vmem:[#allocation8 + $0xc] sm:$0x1] %v1123
    %1145 = vst [vmem:[#allocation8 + $0x14] sm:$0x1] %v1131
    %1146 = vst [vmem:[#allocation8 + $0x1c] sm:$0x1] %v1133
    %1147 = vst [vmem:[#allocation8 + $0x24] sm:$0x1] %v1116
    %1148 = vst [vmem:[#allocation8 + $0x2c] sm:$0x1] %v1130
    %1149 = vst [vmem:[#allocation8 + $0x34] sm:$0x1] %v1132
    %1150 = vst [vmem:[#allocation8 + $0x3c] sm:$0x1] %v1134
    %s1151 = scalar_lea.vmem [#allocation3], 60
    %v1152 = vld [vmem:[%s1151] sm:$0xff]
    %v1153 = vld [vmem:[%s1151 + $0x8] sm:$0xf]
    %v1154 = vunpack.c.l.bf16 %v1152
    %v1155 = vunpack.c.h.bf16 %v1152
    %v1156 = vunpack.c.l.bf16 %v1153
    %v1157 = vpack.c.bf16 %v1083, %v1083
    %1158 = vmatprep.subr.bf16.mxu0 %v203
    %1159 = vmatpush1.bf16.msra.mxu0 %v202
    %1160 = vmatprep.subr.bf16.mxu0 %v200
    %1161 = vmatpush1.bf16.msra.mxu0 %v199
    %1162 = vmatprep.subr.bf16.mxu0 %v197
    %1163 = vmatpush1.bf16.msra.mxu0 %v196
    %1164 = vmatprep.subr.bf16.mxu0 %v194
    %1165 = vmatpush1.bf16.msra.mxu0 %v193
    %1166 = vmatprep.subr.bf16.mxu0 %v191
    %1167 = vmatpush1.bf16.msra.mxu0 %v190
    %1168 = vmatprep.subr.bf16.mxu0 %v188
    %1169 = vmatpush1.bf16.msra.mxu0 %v187
    %1170 = vmatprep.subr.bf16.mxu0 %v185
    %1171 = vmatpush1.bf16.msra.mxu0 %v184
    %1172 = vmatprep.subr.bf16.mxu0 %v182
    %1173 = vmatpush1.bf16.msra.mxu0 %v181
    %1174 = vmatprep.subr.bf16.mxu0 0
    %1175 = vmatpush2.bf16.msra.mxu0 0
    %1176 = vmatprep.subr.bf16.mxu0 0
    %1177 = vmatpush2.bf16.msra.mxu0 0
    %1178 = vmatprep.subr.bf16.mxu0 0
    %1179 = vmatpush2.bf16.msra.mxu0 0
    %1180 = vmatprep.subr.bf16.mxu0 0
    %1181 = vmatpush2.bf16.msra.mxu0 0
    %1182 = vmatprep.subr.bf16.mxu0 0
    %1183 = vmatpush2.bf16.msra.mxu0 0
    %1184 = vmatprep.subr.bf16.mxu0 0
    %1185 = vmatpush2.bf16.msra.mxu0 0
    %1186 = vmatprep.subr.bf16.mxu0 0
    %1187 = vmatpush2.bf16.msra.mxu0 0
    %1188 = vmatprep.subr.bf16.mxu0 0
    %1189 = vmatpush2.bf16.msra.mxu0 0
    %1190 = vmatprep.mubr.bf16.mxu0 0
    %1191 = vmatmul.mubr.bf16.gmra.mxu0 %v1157
    %v1192 = vpop.f32.mrf.mxu0
    %v1193 = vadd.f32 0.0, %v1192
    %v1194 = vpop.f32.mrf.mxu0
    %v1195 = vadd.f32 0.0, %v1194
    %v1196 = vpop.f32.mrf.mxu0
    %v1197 = vpop.f32.mrf.mxu0
    %1198 = vdwg.mxu0
    %1199 = vmatprep.subr.bf16.mxu0 0
    %1200 = vmatpush1.bf16.msra.mxu0 %v204
    %1201 = vmatprep.subr.bf16.mxu0 0
    %1202 = vmatpush1.bf16.msra.mxu0 %v201
    %1203 = vmatprep.subr.bf16.mxu0 0
    %1204 = vmatpush1.bf16.msra.mxu0 %v198
    %1205 = vmatprep.subr.bf16.mxu0 0
    %1206 = vmatpush1.bf16.msra.mxu0 %v195
    %1207 = vmatprep.subr.bf16.mxu0 0
    %1208 = vmatpush1.bf16.msra.mxu0 %v192
    %1209 = vmatprep.subr.bf16.mxu0 0
    %1210 = vmatpush1.bf16.msra.mxu0 %v189
    %1211 = vmatprep.subr.bf16.mxu0 0
    %1212 = vmatpush1.bf16.msra.mxu0 %v186
    %1213 = vmatprep.subr.bf16.mxu0 0
    %1214 = vmatpush1.bf16.msra.mxu0 %v183
    %1215 = vmatprep.subr.bf16.mxu0 0
    %1216 = vmatpush2.bf16.msra.mxu0 0
    %1217 = vmatprep.subr.bf16.mxu0 0
    %1218 = vmatpush2.bf16.msra.mxu0 0
    %1219 = vmatprep.subr.bf16.mxu0 0
    %1220 = vmatpush2.bf16.msra.mxu0 0
    %1221 = vmatprep.subr.bf16.mxu0 0
    %1222 = vmatpush2.bf16.msra.mxu0 0
    %1223 = vmatprep.subr.bf16.mxu0 0
    %1224 = vmatpush2.bf16.msra.mxu0 0
    %1225 = vmatprep.subr.bf16.mxu0 0
    %1226 = vmatpush2.bf16.msra.mxu0 0
    %1227 = vmatprep.subr.bf16.mxu0 0
    %1228 = vmatpush2.bf16.msra.mxu0 0
    %1229 = vmatprep.subr.bf16.mxu0 0
    %1230 = vmatpush2.bf16.msra.mxu0 0
    %1231 = vmatprep.mubr.bf16.mxu0 0
    %1232 = vmatmul.mubr.bf16.gmra.mxu0 %v1157
    %v1233 = vpop.f32.mrf.mxu0
    %v1234 = vadd.f32 0.0, %v1233
    %v1235 = vpop.f32.mrf.mxu0
    %v1236 = vpop.f32.mrf.mxu0
    %v1237 = vpop.f32.mrf.mxu0
    %1238 = vdwg.mxu0
    %v1239 = vadd.f32 %v1154, %v1193
    %v1240 = vadd.f32 %v1155, %v1195
    %v1241 = vxor.u32 %v1239, 2147483648
    %v1242 = vxor.u32 %v1240, 2147483648
    %v1243 = vmul.f32 %v1241, 1.442695
    %v1244 = vpow.pop %v1243
    %v1245 = vmul.f32 %v1242, 1.442695
    %v1246 = vpow.pop %v1245
    %v1247 = vadd.f32 %v1244, 1.0
    %v1248 = vadd.f32 %v1246, 1.0
    %v1249 = vrcp.pop %v1247
    %v1250 = vmul.f32 1.0, %v1249
    %v1251 = vrcp.pop %v1248
    %v1252 = vmul.f32 1.0, %v1251
    %v1253 = vadd.f32 %v1234, %v92
    %v1254 = vmul.f32 %v1250, %v1253
    %v1255 = vadd.f32 %v1156, %v1254
    %v1256 = vtanh.pop %v1255
    %v1257 = vsub.f32 %v1083, %v1256
    %v1258 = vmul.f32 %v1252, %v1257
    %v1259 = vadd.f32 %v1256, %v1258
    %s1260 = scalar_lea.vmem %s1, 40
    %v1261 = vld [vmem:[%s1260] sm:$0xff]
    %v1262 = vsub.f32 %v1259, %v1083
    %1264 = vset.pattern.permute.xlu0 0
    %1265 = vperm.xlu0 %1264, %v1261
    %v1266 = vpop.permute.xlu0 %1265
    %v1268 = vmul.f32 %v1266, %v1262
    %v1269 = vadd.f32 %v1083, %v1268
    %v1270 = vmul.f32 %v1266, %v1259
    %v1272 = vcombine.high %v1270, %v1270
    %v1274 = vunpack.c.l.s4 1966171168
    %v1275 = vunpack.c.0.s8 %v1274
    %v1276 = vlaneseq
    %v1277 = vshrl.u32 %v1276, 7
    %v1278 = vsub.s32 %v1275, %v1277
    %v1279 = vrot.slane %v1270, %v1278
    %v1281 = vunpack.c.l.s4 1966171168
    %v1282 = vunpack.c.0.s8 %v1281
    %v1283 = vlaneseq
    %v1284 = vshrl.u32 %v1283, 7
    %v1285 = vsub.s32 %v1282, %v1284
    %v1286 = vrot.slane %v1272, %v1285
    %v1287 = vcombine.high %v1279, %v1279
    %v1288 = vcombine.high %v1286, %v1286
    %v1290 = vunpack.c.l.s4 1966171168
    %v1291 = vunpack.c.0.s8 %v1290
    %v1292 = vlaneseq
    %v1293 = vshrl.u32 %v1292, 7
    %v1294 = vsub.s32 %v1291, %v1293
    %v1295 = vrot.slane %v1279, %v1294
    %v1297 = vunpack.c.l.s4 1966171168
    %v1298 = vunpack.c.0.s8 %v1297
    %v1299 = vlaneseq
    %v1300 = vshrl.u32 %v1299, 7
    %v1301 = vsub.s32 %v1298, %v1300
    %v1302 = vrot.slane %v1286, %v1301
    %v1304 = vunpack.c.l.s4 1966171168
    %v1305 = vunpack.c.0.s8 %v1304
    %v1306 = vlaneseq
    %v1307 = vshrl.u32 %v1306, 7
    %v1308 = vsub.s32 %v1305, %v1307
    %v1309 = vrot.slane %v1287, %v1308
    %v1311 = vunpack.c.l.s4 1966171168
    %v1312 = vunpack.c.0.s8 %v1311
    %v1313 = vlaneseq
    %v1314 = vshrl.u32 %v1313, 7
    %v1315 = vsub.s32 %v1312, %v1314
    %v1316 = vrot.slane %v1288, %v1315
    %v1317 = vcombine.high %v1295, %v1295
    %v1318 = vcombine.high %v1302, %v1302
    %v1319 = vcombine.high %v1309, %v1309
    %v1320 = vcombine.high %v1316, %v1316
    %1329 = vst [vmem:[#allocation8 + $0x5] sm:$0x1] %v1295
    %1330 = vst [vmem:[#allocation8 + $0xd] sm:$0x1] %v1309
    %1331 = vst [vmem:[#allocation8 + $0x15] sm:$0x1] %v1317
    %1332 = vst [vmem:[#allocation8 + $0x1d] sm:$0x1] %v1319
    %1333 = vst [vmem:[#allocation8 + $0x25] sm:$0x1] %v1302
    %1334 = vst [vmem:[#allocation8 + $0x2d] sm:$0x1] %v1316
    %1335 = vst [vmem:[#allocation8 + $0x35] sm:$0x1] %v1318
    %1336 = vst [vmem:[#allocation8 + $0x3d] sm:$0x1] %v1320
    %s1337 = scalar_lea.vmem [#allocation3], 72
    %v1338 = vld [vmem:[%s1337] sm:$0xff]
    %v1339 = vld [vmem:[%s1337 + $0x8] sm:$0xf]
    %v1340 = vunpack.c.l.bf16 %v1338
    %v1341 = vunpack.c.h.bf16 %v1338
    %v1342 = vunpack.c.l.bf16 %v1339
    %v1343 = vpack.c.bf16 %v1269, %v1269
    %1344 = vmatprep.subr.bf16.mxu0 %v203
    %1345 = vmatpush1.bf16.msra.mxu0 %v202
    %1346 = vmatprep.subr.bf16.mxu0 %v200
    %1347 = vmatpush1.bf16.msra.mxu0 %v199
    %1348 = vmatprep.subr.bf16.mxu0 %v197
    %1349 = vmatpush1.bf16.msra.mxu0 %v196
    %1350 = vmatprep.subr.bf16.mxu0 %v194
    %1351 = vmatpush1.bf16.msra.mxu0 %v193
    %1352 = vmatprep.subr.bf16.mxu0 %v191
    %1353 = vmatpush1.bf16.msra.mxu0 %v190
    %1354 = vmatprep.subr.bf16.mxu0 %v188
    %1355 = vmatpush1.bf16.msra.mxu0 %v187
    %1356 = vmatprep.subr.bf16.mxu0 %v185
    %1357 = vmatpush1.bf16.msra.mxu0 %v184
    %1358 = vmatprep.subr.bf16.mxu0 %v182
    %1359 = vmatpush1.bf16.msra.mxu0 %v181
    %1360 = vmatprep.subr.bf16.mxu0 0
    %1361 = vmatpush2.bf16.msra.mxu0 0
    %1362 = vmatprep.subr.bf16.mxu0 0
    %1363 = vmatpush2.bf16.msra.mxu0 0
    %1364 = vmatprep.subr.bf16.mxu0 0
    %1365 = vmatpush2.bf16.msra.mxu0 0
    %1366 = vmatprep.subr.bf16.mxu0 0
    %1367 = vmatpush2.bf16.msra.mxu0 0
    %1368 = vmatprep.subr.bf16.mxu0 0
    %1369 = vmatpush2.bf16.msra.mxu0 0
    %1370 = vmatprep.subr.bf16.mxu0 0
    %1371 = vmatpush2.bf16.msra.mxu0 0
    %1372 = vmatprep.subr.bf16.mxu0 0
    %1373 = vmatpush2.bf16.msra.mxu0 0
    %1374 = vmatprep.subr.bf16.mxu0 0
    %1375 = vmatpush2.bf16.msra.mxu0 0
    %1376 = vmatprep.mubr.bf16.mxu0 0
    %1377 = vmatmul.mubr.bf16.gmra.mxu0 %v1343
    %v1378 = vpop.f32.mrf.mxu0
    %v1379 = vadd.f32 0.0, %v1378
    %v1380 = vpop.f32.mrf.mxu0
    %v1381 = vadd.f32 0.0, %v1380
    %v1382 = vpop.f32.mrf.mxu0
    %v1383 = vpop.f32.mrf.mxu0
    %1384 = vdwg.mxu0
    %1385 = vmatprep.subr.bf16.mxu0 0
    %1386 = vmatpush1.bf16.msra.mxu0 %v204
    %1387 = vmatprep.subr.bf16.mxu0 0
    %1388 = vmatpush1.bf16.msra.mxu0 %v201
    %1389 = vmatprep.subr.bf16.mxu0 0
    %1390 = vmatpush1.bf16.msra.mxu0 %v198
    %1391 = vmatprep.subr.bf16.mxu0 0
    %1392 = vmatpush1.bf16.msra.mxu0 %v195
    %1393 = vmatprep.subr.bf16.mxu0 0
    %1394 = vmatpush1.bf16.msra.mxu0 %v192
    %1395 = vmatprep.subr.bf16.mxu0 0
    %1396 = vmatpush1.bf16.msra.mxu0 %v189
    %1397 = vmatprep.subr.bf16.mxu0 0
    %1398 = vmatpush1.bf16.msra.mxu0 %v186
    %1399 = vmatprep.subr.bf16.mxu0 0
    %1400 = vmatpush1.bf16.msra.mxu0 %v183
    %1401 = vmatprep.subr.bf16.mxu0 0
    %1402 = vmatpush2.bf16.msra.mxu0 0
    %1403 = vmatprep.subr.bf16.mxu0 0
    %1404 = vmatpush2.bf16.msra.mxu0 0
    %1405 = vmatprep.subr.bf16.mxu0 0
    %1406 = vmatpush2.bf16.msra.mxu0 0
    %1407 = vmatprep.subr.bf16.mxu0 0
    %1408 = vmatpush2.bf16.msra.mxu0 0
    %1409 = vmatprep.subr.bf16.mxu0 0
    %1410 = vmatpush2.bf16.msra.mxu0 0
    %1411 = vmatprep.subr.bf16.mxu0 0
    %1412 = vmatpush2.bf16.msra.mxu0 0
    %1413 = vmatprep.subr.bf16.mxu0 0
    %1414 = vmatpush2.bf16.msra.mxu0 0
    %1415 = vmatprep.subr.bf16.mxu0 0
    %1416 = vmatpush2.bf16.msra.mxu0 0
    %1417 = vmatprep.mubr.bf16.mxu0 0
    %1418 = vmatmul.mubr.bf16.gmra.mxu0 %v1343
    %v1419 = vpop.f32.mrf.mxu0
    %v1420 = vadd.f32 0.0, %v1419
    %v1421 = vpop.f32.mrf.mxu0
    %v1422 = vpop.f32.mrf.mxu0
    %v1423 = vpop.f32.mrf.mxu0
    %1424 = vdwg.mxu0
    %v1425 = vadd.f32 %v1340, %v1379
    %v1426 = vadd.f32 %v1341, %v1381
    %v1427 = vxor.u32 %v1425, 2147483648
    %v1428 = vxor.u32 %v1426, 2147483648
    %v1429 = vmul.f32 %v1427, 1.442695
    %v1430 = vpow.pop %v1429
    %v1431 = vmul.f32 %v1428, 1.442695
    %v1432 = vpow.pop %v1431
    %v1433 = vadd.f32 %v1430, 1.0
    %v1434 = vadd.f32 %v1432, 1.0
    %v1435 = vrcp.pop %v1433
    %v1436 = vmul.f32 1.0, %v1435
    %v1437 = vrcp.pop %v1434
    %v1438 = vmul.f32 1.0, %v1437
    %v1439 = vadd.f32 %v1420, %v92
    %v1440 = vmul.f32 %v1436, %v1439
    %v1441 = vadd.f32 %v1342, %v1440
    %v1442 = vtanh.pop %v1441
    %v1443 = vsub.f32 %v1269, %v1442
    %v1444 = vmul.f32 %v1438, %v1443
    %v1445 = vadd.f32 %v1442, %v1444
    %s1446 = scalar_lea.vmem %s1, 48
    %v1447 = vld [vmem:[%s1446] sm:$0xff]
    %v1448 = vsub.f32 %v1445, %v1269
    %1450 = vset.pattern.permute.xlu0 0
    %1451 = vperm.xlu0 %1450, %v1447
    %v1452 = vpop.permute.xlu0 %1451
    %v1454 = vmul.f32 %v1452, %v1448
    %v1455 = vadd.f32 %v1269, %v1454
    %v1456 = vmul.f32 %v1452, %v1445
    %v1458 = vcombine.high %v1456, %v1456
    %v1460 = vunpack.c.l.s4 1966171168
    %v1461 = vunpack.c.0.s8 %v1460
    %v1462 = vlaneseq
    %v1463 = vshrl.u32 %v1462, 7
    %v1464 = vsub.s32 %v1461, %v1463
    %v1465 = vrot.slane %v1456, %v1464
    %v1467 = vunpack.c.l.s4 1966171168
    %v1468 = vunpack.c.0.s8 %v1467
    %v1469 = vlaneseq
    %v1470 = vshrl.u32 %v1469, 7
    %v1471 = vsub.s32 %v1468, %v1470
    %v1472 = vrot.slane %v1458, %v1471
    %v1473 = vcombine.high %v1465, %v1465
    %v1474 = vcombine.high %v1472, %v1472
    %v1476 = vunpack.c.l.s4 1966171168
    %v1477 = vunpack.c.0.s8 %v1476
    %v1478 = vlaneseq
    %v1479 = vshrl.u32 %v1478, 7
    %v1480 = vsub.s32 %v1477, %v1479
    %v1481 = vrot.slane %v1465, %v1480
    %v1483 = vunpack.c.l.s4 1966171168
    %v1484 = vunpack.c.0.s8 %v1483
    %v1485 = vlaneseq
    %v1486 = vshrl.u32 %v1485, 7
    %v1487 = vsub.s32 %v1484, %v1486
    %v1488 = vrot.slane %v1472, %v1487
    %v1490 = vunpack.c.l.s4 1966171168
    %v1491 = vunpack.c.0.s8 %v1490
    %v1492 = vlaneseq
    %v1493 = vshrl.u32 %v1492, 7
    %v1494 = vsub.s32 %v1491, %v1493
    %v1495 = vrot.slane %v1473, %v1494
    %v1497 = vunpack.c.l.s4 1966171168
    %v1498 = vunpack.c.0.s8 %v1497
    %v1499 = vlaneseq
    %v1500 = vshrl.u32 %v1499, 7
    %v1501 = vsub.s32 %v1498, %v1500
    %v1502 = vrot.slane %v1474, %v1501
    %v1503 = vcombine.high %v1481, %v1481
    %v1504 = vcombine.high %v1488, %v1488
    %v1505 = vcombine.high %v1495, %v1495
    %v1506 = vcombine.high %v1502, %v1502
    %1515 = vst [vmem:[#allocation8 + $0x6] sm:$0x1] %v1481
    %1516 = vst [vmem:[#allocation8 + $0xe] sm:$0x1] %v1495
    %1517 = vst [vmem:[#allocation8 + $0x16] sm:$0x1] %v1503
    %1518 = vst [vmem:[#allocation8 + $0x1e] sm:$0x1] %v1505
    %1519 = vst [vmem:[#allocation8 + $0x26] sm:$0x1] %v1488
    %1520 = vst [vmem:[#allocation8 + $0x2e] sm:$0x1] %v1502
    %1521 = vst [vmem:[#allocation8 + $0x36] sm:$0x1] %v1504
    %1522 = vst [vmem:[#allocation8 + $0x3e] sm:$0x1] %v1506
    %s1523 = scalar_lea.vmem [#allocation3], 84
    %v1524 = vld [vmem:[%s1523] sm:$0xff]
    %v1525 = vld [vmem:[%s1523 + $0x8] sm:$0xf]
    %v1526 = vunpack.c.l.bf16 %v1524
    %v1527 = vunpack.c.h.bf16 %v1524
    %v1528 = vunpack.c.l.bf16 %v1525
    %v1529 = vpack.c.bf16 %v1455, %v1455
    %1530 = vmatprep.subr.bf16.mxu0 %v203
    %1531 = vmatpush1.bf16.msra.mxu0 %v202
    %1532 = vmatprep.subr.bf16.mxu0 %v200
    %1533 = vmatpush1.bf16.msra.mxu0 %v199
    %1534 = vmatprep.subr.bf16.mxu0 %v197
    %1535 = vmatpush1.bf16.msra.mxu0 %v196
    %1536 = vmatprep.subr.bf16.mxu0 %v194
    %1537 = vmatpush1.bf16.msra.mxu0 %v193
    %1538 = vmatprep.subr.bf16.mxu0 %v191
    %1539 = vmatpush1.bf16.msra.mxu0 %v190
    %1540 = vmatprep.subr.bf16.mxu0 %v188
    %1541 = vmatpush1.bf16.msra.mxu0 %v187
    %1542 = vmatprep.subr.bf16.mxu0 %v185
    %1543 = vmatpush1.bf16.msra.mxu0 %v184
    %1544 = vmatprep.subr.bf16.mxu0 %v182
    %1545 = vmatpush1.bf16.msra.mxu0 %v181
    %1546 = vmatprep.subr.bf16.mxu0 0
    %1547 = vmatpush2.bf16.msra.mxu0 0
    %1548 = vmatprep.subr.bf16.mxu0 0
    %1549 = vmatpush2.bf16.msra.mxu0 0
    %1550 = vmatprep.subr.bf16.mxu0 0
    %1551 = vmatpush2.bf16.msra.mxu0 0
    %1552 = vmatprep.subr.bf16.mxu0 0
    %1553 = vmatpush2.bf16.msra.mxu0 0
    %1554 = vmatprep.subr.bf16.mxu0 0
    %1555 = vmatpush2.bf16.msra.mxu0 0
    %1556 = vmatprep.subr.bf16.mxu0 0
    %1557 = vmatpush2.bf16.msra.mxu0 0
    %1558 = vmatprep.subr.bf16.mxu0 0
    %1559 = vmatpush2.bf16.msra.mxu0 0
    %1560 = vmatprep.subr.bf16.mxu0 0
    %1561 = vmatpush2.bf16.msra.mxu0 0
    %1562 = vmatprep.mubr.bf16.mxu0 0
    %1563 = vmatmul.mubr.bf16.gmra.mxu0 %v1529
    %v1564 = vpop.f32.mrf.mxu0
    %v1565 = vadd.f32 0.0, %v1564
    %v1566 = vpop.f32.mrf.mxu0
    %v1567 = vadd.f32 0.0, %v1566
    %v1568 = vpop.f32.mrf.mxu0
    %v1569 = vpop.f32.mrf.mxu0
    %1570 = vdwg.mxu0
    %1571 = vmatprep.subr.bf16.mxu0 0
    %1572 = vmatpush1.bf16.msra.mxu0 %v204
    %1573 = vmatprep.subr.bf16.mxu0 0
    %1574 = vmatpush1.bf16.msra.mxu0 %v201
    %1575 = vmatprep.subr.bf16.mxu0 0
    %1576 = vmatpush1.bf16.msra.mxu0 %v198
    %1577 = vmatprep.subr.bf16.mxu0 0
    %1578 = vmatpush1.bf16.msra.mxu0 %v195
    %1579 = vmatprep.subr.bf16.mxu0 0
    %1580 = vmatpush1.bf16.msra.mxu0 %v192
    %1581 = vmatprep.subr.bf16.mxu0 0
    %1582 = vmatpush1.bf16.msra.mxu0 %v189
    %1583 = vmatprep.subr.bf16.mxu0 0
    %1584 = vmatpush1.bf16.msra.mxu0 %v186
    %1585 = vmatprep.subr.bf16.mxu0 0
    %1586 = vmatpush1.bf16.msra.mxu0 %v183
    %1587 = vmatprep.subr.bf16.mxu0 0
    %1588 = vmatpush2.bf16.msra.mxu0 0
    %1589 = vmatprep.subr.bf16.mxu0 0
    %1590 = vmatpush2.bf16.msra.mxu0 0
    %1591 = vmatprep.subr.bf16.mxu0 0
    %1592 = vmatpush2.bf16.msra.mxu0 0
    %1593 = vmatprep.subr.bf16.mxu0 0
    %1594 = vmatpush2.bf16.msra.mxu0 0
    %1595 = vmatprep.subr.bf16.mxu0 0
    %1596 = vmatpush2.bf16.msra.mxu0 0
    %1597 = vmatprep.subr.bf16.mxu0 0
    %1598 = vmatpush2.bf16.msra.mxu0 0
    %1599 = vmatprep.subr.bf16.mxu0 0
    %1600 = vmatpush2.bf16.msra.mxu0 0
    %1601 = vmatprep.subr.bf16.mxu0 0
    %1602 = vmatpush2.bf16.msra.mxu0 0
    %1603 = vmatprep.mubr.bf16.mxu0 0
    %1604 = vmatmul.mubr.bf16.gmra.mxu0 %v1529
    %v1605 = vpop.f32.mrf.mxu0
    %v1606 = vadd.f32 0.0, %v1605
    %v1607 = vpop.f32.mrf.mxu0
    %v1608 = vpop.f32.mrf.mxu0
    %v1609 = vpop.f32.mrf.mxu0
    %1610 = vdwg.mxu0
    %v1611 = vadd.f32 %v1526, %v1565
    %v1612 = vadd.f32 %v1527, %v1567
    %v1613 = vxor.u32 %v1611, 2147483648
    %v1614 = vxor.u32 %v1612, 2147483648
    %v1615 = vmul.f32 %v1613, 1.442695
    %v1616 = vpow.pop %v1615
    %v1617 = vmul.f32 %v1614, 1.442695
    %v1618 = vpow.pop %v1617
    %v1619 = vadd.f32 %v1616, 1.0
    %v1620 = vadd.f32 %v1618, 1.0
    %v1621 = vrcp.pop %v1619
    %v1622 = vmul.f32 1.0, %v1621
    %v1623 = vrcp.pop %v1620
    %v1624 = vmul.f32 1.0, %v1623
    %v1625 = vadd.f32 %v1606, %v92
    %v1626 = vmul.f32 %v1622, %v1625
    %v1627 = vadd.f32 %v1528, %v1626
    %v1628 = vtanh.pop %v1627
    %v1629 = vsub.f32 %v1455, %v1628
    %v1630 = vmul.f32 %v1624, %v1629
    %v1631 = vadd.f32 %v1628, %v1630
    %s1632 = scalar_lea.vmem %s1, 56
    %v1633 = vld [vmem:[%s1632] sm:$0xff]
    %v1634 = vsub.f32 %v1631, %v1455
    %1636 = vset.pattern.permute.xlu0 0
    %1637 = vperm.xlu0 %1636, %v1633
    %v1638 = vpop.permute.xlu0 %1637
    %v1640 = vmul.f32 %v1638, %v1634
    %v1641 = vadd.f32 %v1455, %v1640
    %v1642 = vmul.f32 %v1638, %v1631
    %v1644 = vcombine.high %v1642, %v1642
    %v1646 = vunpack.c.l.s4 1966171168
    %v1647 = vunpack.c.0.s8 %v1646
    %v1648 = vlaneseq
    %v1649 = vshrl.u32 %v1648, 7
    %v1650 = vsub.s32 %v1647, %v1649
    %v1651 = vrot.slane %v1642, %v1650
    %v1653 = vunpack.c.l.s4 1966171168
    %v1654 = vunpack.c.0.s8 %v1653
    %v1655 = vlaneseq
    %v1656 = vshrl.u32 %v1655, 7
    %v1657 = vsub.s32 %v1654, %v1656
    %v1658 = vrot.slane %v1644, %v1657
    %v1659 = vcombine.high %v1651, %v1651
    %v1660 = vcombine.high %v1658, %v1658
    %v1662 = vunpack.c.l.s4 1966171168
    %v1663 = vunpack.c.0.s8 %v1662
    %v1664 = vlaneseq
    %v1665 = vshrl.u32 %v1664, 7
    %v1666 = vsub.s32 %v1663, %v1665
    %v1667 = vrot.slane %v1651, %v1666
    %v1669 = vunpack.c.l.s4 1966171168
    %v1670 = vunpack.c.0.s8 %v1669
    %v1671 = vlaneseq
    %v1672 = vshrl.u32 %v1671, 7
    %v1673 = vsub.s32 %v1670, %v1672
    %v1674 = vrot.slane %v1658, %v1673
    %v1676 = vunpack.c.l.s4 1966171168
    %v1677 = vunpack.c.0.s8 %v1676
    %v1678 = vlaneseq
    %v1679 = vshrl.u32 %v1678, 7
    %v1680 = vsub.s32 %v1677, %v1679
    %v1681 = vrot.slane %v1659, %v1680
    %v1683 = vunpack.c.l.s4 1966171168
    %v1684 = vunpack.c.0.s8 %v1683
    %v1685 = vlaneseq
    %v1686 = vshrl.u32 %v1685, 7
    %v1687 = vsub.s32 %v1684, %v1686
    %v1688 = vrot.slane %v1660, %v1687
    %v1689 = vcombine.high %v1667, %v1667
    %v1690 = vcombine.high %v1674, %v1674
    %v1691 = vcombine.high %v1681, %v1681
    %v1692 = vcombine.high %v1688, %v1688
    %1701 = vst [vmem:[#allocation8 + $0x7] sm:$0x1] %v1667
    %1702 = vst [vmem:[#allocation8 + $0xf] sm:$0x1] %v1681
    %1703 = vst [vmem:[#allocation8 + $0x17] sm:$0x1] %v1689
    %1704 = vst [vmem:[#allocation8 + $0x1f] sm:$0x1] %v1691
    %1705 = vst [vmem:[#allocation8 + $0x27] sm:$0x1] %v1674
    %1706 = vst [vmem:[#allocation8 + $0x2f] sm:$0x1] %v1688
    %1707 = vst [vmem:[#allocation8 + $0x37] sm:$0x1] %v1690
    %1708 = vst [vmem:[#allocation8 + $0x3f] sm:$0x1] %v1692
    %1709 = vst [vmem:[#allocation2] sm:$0xff] %v1641
    // Predicated region
    $region30: #{tpu_custom_call.1} parent=1 // pred_check
      %p1710 = pneg %p50
    $region31: #{tpu_custom_call.1} parent=1 // pred_check_branch
      %1712 = sbr.rel (%p1710) target = $region33
    $region32: #{tpu_custom_call.1} parent=1 // pred_region
      %1713 = vst [vmem:[#allocation9] sm:$0xff] %v1641
    $region33: #{tpu_custom_call.1} parent=1 // pred_fallthru
      _
    // Predicated region
    $region34: #{tpu_custom_call.1} parent=1 // pred_check
      _
    $region35: #{tpu_custom_call.1} parent=1 // pred_check_branch
      %1715 = sbr.rel (0) target = $region37
    $region36: #{tpu_custom_call.1} parent=1 // pred_region
      %s1717 = ssub.s32 1024, 1024
      %1718 = vsyncadd [#allocation5], %s1717
      %s1719 = sshll.u32 [#allocation8], 4
      %s1720 = int_to_ptr.vmem [resolvable:$true] %s1719
      %1725 = dma.vmem_to_hbm [thread:$0]  %s1720, 1024, %s4, [#allocation5], 128, 128, 8
    $region37: #{tpu_custom_call.1} parent=1 // pred_fallthru
      _
    // Predicated region
    $region38: #{tpu_custom_call.1} parent=1 // pred_check
      _
    $region39: #{tpu_custom_call.1} parent=1 // pred_check_branch
      %1727 = sbr.rel (0) target = $region41
    $region40: #{tpu_custom_call.1} parent=1 // pred_region
      %s1729 = ssub.s32 128, 128
      %1730 = vsyncadd [#allocation10], %s1729
      %s1732 = sshll.u32 [#allocation9], 4
      %s1733 = int_to_ptr.vmem [resolvable:$true] %s1732
      %1735 = dma.vmem_to_hbm [thread:$0]  %s1733, 128, %s5, [#allocation10]
    $region41: #{tpu_custom_call.1} parent=1 // pred_fallthru
      _
    // Predicated region
    $region42: #{tpu_custom_call.1} parent=1 // pred_check
      _
    $region43: #{tpu_custom_call.1} parent=1 // pred_check_branch
      %1737 = sbr.rel (0) target = $region45
    $region44: #{tpu_custom_call.1} parent=1 // pred_region
      %1738 = dma.done [#allocation5], 1024
    $region45: #{tpu_custom_call.1} parent=1 // pred_fallthru
      _
    // Predicated region
    $region46: #{tpu_custom_call.1} parent=1 // pred_check
      _
    $region47: #{tpu_custom_call.1} parent=1 // pred_check_branch
      %1740 = sbr.rel (0) target = $region49
    $region48: #{tpu_custom_call.1} parent=1 // pred_region
      %1741 = dma.done [#allocation10], 128
    $region49: #{tpu_custom_call.1} parent=1 // pred_fallthru
      _
    %1742 = vsyncpa [#allocation4], 1
    %1743 = vsyncpa [#allocation7], 1
    %1744 = vsyncpa [#allocation5], 1
    %1745 = vsyncpa [#allocation10], 1

</llo_original>
